<compile_context>
chip_gen: v7x
topology: tpu7x:2x2x1
jax: 0.10.0
libtpu: 0.0.40
codegen_flags: <defaults>
</compile_context>

<pallas_src>
import functools

import jax
import jax.numpy as jnp
from jax.experimental import pallas as pl
from jax.experimental.pallas import tpu as pltpu


# ----------------------------------------------------------------------------
# Pallas kernel: fused LinearAttention for one batch element.
# ----------------------------------------------------------------------------
def linear_attention_kernel(x_ref, wqkv_ref, wo_ref, bo_ref, g_ref, o_ref, *,
                            heads, dim_head, inv_n, scale, eps):
    hd = heads * dim_head

    x = x_ref[0].astype(jnp.bfloat16)                          # (C, N)

    # to_qkv 1x1 conv (no bias): (3*H*Dh, C) @ (C, N) -> (3*H*Dh, N), f32 acc.
    qkv = jnp.dot(wqkv_ref[...], x, preferred_element_type=jnp.float32)
    n = qkv.shape[-1]
    qkv = qkv.reshape(3 * heads, dim_head, n)                  # (3H, Dh, N)
    q = qkv[:heads]                                            # (H, Dh, N)
    k = qkv[heads:2 * heads]
    v = qkv[2 * heads:]

    # q: softmax over dim_head (per head, sublanes), times dim_head**-0.5.
    q = jnp.exp(q - jnp.max(q, axis=1, keepdims=True))
    q = q * (scale * pl.reciprocal(jnp.sum(q, axis=1, keepdims=True),
                                   approx=True))

    # k: softmax over the spatial axis (lanes); per-row, head structure free.
    k = jnp.exp(k - jnp.max(k, axis=-1, keepdims=True))
    k = k * pl.reciprocal(jnp.sum(k, axis=-1, keepdims=True), approx=True)

    # context^T[h,e,d] = (1/N) * sum_n v[h,e,n] * k[h,d,n]   -> (H, Dh, Dh)
    ctx = jnp.einsum("hen,hdn->hed",
                     v.astype(jnp.bfloat16), k.astype(jnp.bfloat16),
                     preferred_element_type=jnp.float32) * inv_n

    # out[h,e,n] = sum_d context[h,d,e] * q[h,d,n]            -> (H, Dh, N)
    out = jnp.einsum("hed,hdn->hen",
                     ctx.astype(jnp.bfloat16), q.astype(jnp.bfloat16),
                     preferred_element_type=jnp.float32)
    out = out.reshape(hd, n)                                   # (H*Dh, N)

    # to_out 1x1 conv: (C, H*Dh) @ (H*Dh, N) + bias -> (C, N)
    o = jnp.dot(wo_ref[...], out.astype(jnp.bfloat16),
                preferred_element_type=jnp.float32) + bo_ref[...]

    # Channel LayerNorm (biased variance over axis 0 = channels), scaled by g.
    mean = jnp.mean(o, axis=0, keepdims=True)
    var = jnp.mean((o - mean) * (o - mean), axis=0, keepdims=True)
    o = (o - mean) * jax.lax.rsqrt(var + eps) * g_ref[...]

    o_ref[0] = o.astype(o_ref.dtype)


# ----------------------------------------------------------------------------
# Wrapper: NCHW in / NCHW out. No transposes — NCHW -> (B, C, N) is free.
# ----------------------------------------------------------------------------
def linear_attention_forward(x_nchw, params, *, heads, dim_head, eps=1e-5):
    B, C, H, W = x_nchw.shape
    N = H * W
    hd = heads * dim_head

    x = x_nchw.reshape(B, C, N)                                # free reshape

    # Weights are tiny; pre-cast once to bf16 for the MXU.
    w_qkv = params["w_qkv"].astype(jnp.bfloat16)               # (3*hd, C)
    w_out = params["w_out"].astype(jnp.bfloat16)               # (C, hd)
    b_out = params["b_out"].reshape(C, 1).astype(jnp.float32)  # (C, 1)
    g = params["g"].reshape(C, 1).astype(jnp.float32)          # (C, 1)

    kernel = functools.partial(
        linear_attention_kernel, heads=heads, dim_head=dim_head,
        inv_n=1.0 / N, scale=float(dim_head) ** -0.5, eps=eps)

    out = pl.pallas_call(
        kernel,
        out_shape=jax.ShapeDtypeStruct((B, C, N), jnp.float32),
        grid=(B,),
        in_specs=[
            pl.BlockSpec((1, C, N), lambda b: (b, 0, 0)),      # x
            pl.BlockSpec((3 * hd, C), lambda b: (0, 0)),       # w_qkv
            pl.BlockSpec((C, hd), lambda b: (0, 0)),           # w_out
            pl.BlockSpec((C, 1), lambda b: (0, 0)),            # b_out
            pl.BlockSpec((C, 1), lambda b: (0, 0)),            # g
        ],
        out_specs=pl.BlockSpec((1, C, N), lambda b: (b, 0, 0)),
        compiler_params=pltpu.CompilerParams(
            dimension_semantics=("parallel",)),
    )(x, w_qkv, w_out, b_out, g)

    return out.reshape(B, C, H, W)


# ----------------------------------------------------------------------------
# Pure-JAX reference mirroring the PyTorch forward, for verification.
# ----------------------------------------------------------------------------
def reference_forward(x_nchw, params, *, heads, dim_head, eps=1e-5):
    B, C, H, W = x_nchw.shape
    N = H * W
    hd = heads * dim_head
    scale = float(dim_head) ** -0.5
    hp = jax.lax.Precision.HIGHEST

    x = x_nchw.reshape(B, C, N).astype(jnp.float32)
    qkv = jnp.einsum("oc,bcn->bon", params["w_qkv"], x, precision=hp)
    q = qkv[:, :hd].reshape(B, heads, dim_head, N)
    k = qkv[:, hd:2 * hd].reshape(B, heads, dim_head, N)
    v = qkv[:, 2 * hd:].reshape(B, heads, dim_head, N)

    q = jax.nn.softmax(q, axis=-2) * scale      # over dim_head
    k = jax.nn.softmax(k, axis=-1)              # over spatial
    v = v / N

    context = jnp.einsum("bhdn,bhen->bhde", k, v, precision=hp)
    out = jnp.einsum("bhde,bhdn->bhen", context, q, precision=hp)
    out = out.reshape(B, hd, N)

    o = jnp.einsum("ce,ben->bcn", params["w_out"], out, precision=hp) \
        + params["b_out"].reshape(1, C, 1)

    mean = jnp.mean(o, axis=1, keepdims=True)
    var = jnp.mean((o - mean) ** 2, axis=1, keepdims=True)
    o = (o - mean) * jax.lax.rsqrt(var + eps) * params["g"].reshape(1, C, 1)
    return o.reshape(B, C, H, W)


# ----------------------------------------------------------------------------
if __name__ == "__main__":
    B, dim, H, W = 2, 32, 16, 16          # dim = channels of x
    heads, dim_head = 4, 32               # module defaults -> hidden_dim = 128
    hd = heads * dim_head

    key = jax.random.PRNGKey(0)
    ks = jax.random.split(key, 5)
    f32 = jnp.float32

    params = dict(
        # to_qkv Conv2d(dim, 3*hidden_dim, 1, bias=False) weight: (3*hd, dim)
        w_qkv=0.2 * jax.random.normal(ks[0], (3 * hd, dim), f32),
        # to_out Conv2d(hidden_dim, dim, 1) weight + bias
        w_out=0.2 * jax.random.normal(ks[1], (dim, hd), f32),
        b_out=0.1 * jax.random.normal(ks[2], (dim,), f32),
        # LayerNorm gain g (1, dim, 1, 1) flattened to (dim,)
        g=1.0 + 0.1 * jax.random.normal(ks[3], (dim,), f32),
    )

    x = jax.random.normal(ks[4], (B, dim, H, W), f32)     # NCHW like PyTorch

    out = jax.block_until_ready(
        linear_attention_forward(x, params, heads=heads, dim_head=dim_head))
    ref = jax.block_until_ready(
        reference_forward(x, params, heads=heads, dim_head=dim_head))

    assert out.shape == (B, dim, H, W)
    assert bool(jnp.allclose(out, ref, atol=2e-2, rtol=2e-2)), \
        "mismatch vs reference"
    print("KERNEL_OK")
</pallas_src>

<mosaic_0001>
module attributes {stable_mosaic.version = 11 : i64} {
  func.func @linear_attention_kernel(%arg0: i32, %arg1: memref<1x32x256xf32, #tpu.memory_space<vmem>>, %arg2: memref<384x32xbf16, #tpu.memory_space<vmem>>, %arg3: memref<32x128xbf16, #tpu.memory_space<vmem>>, %arg4: memref<32x1xf32, #tpu.memory_space<vmem>>, %arg5: memref<32x1xf32, #tpu.memory_space<vmem>>, %arg6: memref<1x32x256xf32, #tpu.memory_space<vmem>>) attributes {dimension_semantics = [#tpu.dimension_semantics<parallel>], iteration_bounds = array<i64: 2>, scalar_prefetch = 0 : i64, scratch_operands = 0 : i64, tpu.core_type = #tpu.core_type<tc>, window_params = [{transform_indices = @transform_0, window_bounds = array<i64: 1, 32, 256>}, {pipeline_mode = #tpu.pipeline_mode<synchronous>, transform_indices = @transform_1, window_bounds = array<i64: 384, 32>}, {pipeline_mode = #tpu.pipeline_mode<synchronous>, transform_indices = @transform_2, window_bounds = array<i64: 32, 128>}, {pipeline_mode = #tpu.pipeline_mode<synchronous>, transform_indices = @transform_3, window_bounds = array<i64: 32, 1>}, {pipeline_mode = #tpu.pipeline_mode<synchronous>, transform_indices = @transform_4, window_bounds = array<i64: 32, 1>}, {transform_indices = @transform_5, window_bounds = array<i64: 1, 32, 256>}]} {
    %c0 = arith.constant 0 : index
    %c0_0 = arith.constant 0 : index
    %c0_1 = arith.constant 0 : index
    %0 = vector.load %arg1[%c0, %c0_0, %c0_1] : memref<1x32x256xf32, #tpu.memory_space<vmem>>, vector<1x32x256xf32>
    %1 = vector.shape_cast %0 : vector<1x32x256xf32> to vector<32x256xf32>
    %2 = arith.truncf %1 : vector<32x256xf32> to vector<32x256xbf16>
    %c0_2 = arith.constant 0 : index
    %c0_3 = arith.constant 0 : index
    %3 = vector.load %arg2[%c0_2, %c0_3] : memref<384x32xbf16, #tpu.memory_space<vmem>>, vector<384x32xbf16>
    %cst = arith.constant dense<0.000000e+00> : vector<384x256xf32>
    %4 = tpu.matmul %3, %2, %cst {dimension_numbers = #tpu.dot_dimension_numbers<[1], [0], [0], [1], [0, 0, 1, 1], [], []>} : vector<384x32xbf16>, vector<32x256xbf16>, vector<384x256xf32> -> vector<384x256xf32>
    %5 = vector.shape_cast %4 : vector<384x256xf32> to vector<12x32x256xf32>
    %6 = vector.extract_strided_slice %5 {offsets = [0, 0, 0], sizes = [4, 32, 256], strides = [1, 1, 1]} : vector<12x32x256xf32> to vector<4x32x256xf32>
    %7 = vector.extract_strided_slice %5 {offsets = [4, 0, 0], sizes = [4, 32, 256], strides = [1, 1, 1]} : vector<12x32x256xf32> to vector<4x32x256xf32>
    %8 = vector.extract_strided_slice %5 {offsets = [8, 0, 0], sizes = [4, 32, 256], strides = [1, 1, 1]} : vector<12x32x256xf32> to vector<4x32x256xf32>
    %cst_4 = arith.constant dense<0xFF800000> : vector<4x256xf32>
    %9 = vector.multi_reduction <maximumf>, %6, %cst_4 [1] : vector<4x32x256xf32> to vector<4x256xf32>
    %10 = vector.shape_cast %9 : vector<4x256xf32> to vector<4x1x256xf32>
    %11 = vector.broadcast %10 : vector<4x1x256xf32> to vector<4x32x256xf32>
    %12 = arith.subf %6, %11 : vector<4x32x256xf32>
    %13 = math.exp %12 : vector<4x32x256xf32>
    %cst_5 = arith.constant dense<0.000000e+00> : vector<4x256xf32>
    %14 = vector.multi_reduction <add>, %13, %cst_5 [1] : vector<4x32x256xf32> to vector<4x256xf32>
    %15 = vector.shape_cast %14 : vector<4x256xf32> to vector<4x1x256xf32>
    %16 = tpu.reciprocal %15 {approx = true} : vector<4x1x256xf32> -> vector<4x1x256xf32>
    %cst_6 = arith.constant 0.176776692 : f32
    %17 = vector.broadcast %cst_6 : f32 to vector<4x1x256xf32>
    %18 = arith.mulf %17, %16 : vector<4x1x256xf32>
    %19 = vector.broadcast %18 : vector<4x1x256xf32> to vector<4x32x256xf32>
    %20 = arith.mulf %13, %19 : vector<4x32x256xf32>
    %cst_7 = arith.constant dense<0xFF800000> : vector<4x32xf32>
    %21 = vector.multi_reduction <maximumf>, %7, %cst_7 [2] : vector<4x32x256xf32> to vector<4x32xf32>
    %22 = vector.shape_cast %21 : vector<4x32xf32> to vector<4x32x1xf32>
    %23 = vector.broadcast %22 : vector<4x32x1xf32> to vector<4x32x256xf32>
    %24 = arith.subf %7, %23 : vector<4x32x256xf32>
    %25 = math.exp %24 : vector<4x32x256xf32>
    %cst_8 = arith.constant dense<0.000000e+00> : vector<4x32xf32>
    %26 = vector.multi_reduction <add>, %25, %cst_8 [2] : vector<4x32x256xf32> to vector<4x32xf32>
    %27 = vector.shape_cast %26 : vector<4x32xf32> to vector<4x32x1xf32>
    %28 = tpu.reciprocal %27 {approx = true} : vector<4x32x1xf32> -> vector<4x32x1xf32>
    %29 = vector.broadcast %28 : vector<4x32x1xf32> to vector<4x32x256xf32>
    %30 = arith.mulf %25, %29 : vector<4x32x256xf32>
    %31 = arith.truncf %8 : vector<4x32x256xf32> to vector<4x32x256xbf16>
    %32 = arith.truncf %30 : vector<4x32x256xf32> to vector<4x32x256xbf16>
    "tpu.trace_start"() <{level = 10 : i32, message = "hen,hdn->hed"}> : () -> ()
    %cst_9 = arith.constant dense<0.000000e+00> : vector<4x32x32xf32>
    %33 = tpu.matmul %31, %32, %cst_9 {dimension_numbers = #tpu.dot_dimension_numbers<[2], [2], [1], [1], [0, 0, 0, 1, 1, 1], [0], [0]>} : vector<4x32x256xbf16>, vector<4x32x256xbf16>, vector<4x32x32xf32> -> vector<4x32x32xf32>
    "tpu.trace_stop"() : () -> ()
    %cst_10 = arith.constant 3.906250e-03 : f32
    %34 = vector.broadcast %cst_10 : f32 to vector<4x32x32xf32>
    %35 = arith.mulf %33, %34 : vector<4x32x32xf32>
    %36 = arith.truncf %35 : vector<4x32x32xf32> to vector<4x32x32xbf16>
    %37 = arith.truncf %20 : vector<4x32x256xf32> to vector<4x32x256xbf16>
    "tpu.trace_start"() <{level = 10 : i32, message = "hed,hdn->hen"}> : () -> ()
    %cst_11 = arith.constant dense<0.000000e+00> : vector<4x32x256xf32>
    %38 = tpu.matmul %36, %37, %cst_11 {dimension_numbers = #tpu.dot_dimension_numbers<[2], [1], [1], [2], [0, 0, 0, 1, 1, 2], [0], [0]>} : vector<4x32x32xbf16>, vector<4x32x256xbf16>, vector<4x32x256xf32> -> vector<4x32x256xf32>
    "tpu.trace_stop"() : () -> ()
    %39 = vector.shape_cast %38 : vector<4x32x256xf32> to vector<128x256xf32>
    %c0_12 = arith.constant 0 : index
    %c0_13 = arith.constant 0 : index
    %40 = vector.load %arg3[%c0_12, %c0_13] : memref<32x128xbf16, #tpu.memory_space<vmem>>, vector<32x128xbf16>
    %41 = arith.truncf %39 : vector<128x256xf32> to vector<128x256xbf16>
    %cst_14 = arith.constant dense<0.000000e+00> : vector<32x256xf32>
    %42 = tpu.matmul %40, %41, %cst_14 {dimension_numbers = #tpu.dot_dimension_numbers<[1], [0], [0], [1], [0, 0, 1, 1], [], []>} : vector<32x128xbf16>, vector<128x256xbf16>, vector<32x256xf32> -> vector<32x256xf32>
    %c0_15 = arith.constant 0 : index
    %c0_16 = arith.constant 0 : index
    %43 = vector.load %arg4[%c0_15, %c0_16] : memref<32x1xf32, #tpu.memory_space<vmem>>, vector<32x1xf32>
    %44 = vector.broadcast %43 : vector<32x1xf32> to vector<32x256xf32>
    %45 = arith.addf %42, %44 : vector<32x256xf32>
    %cst_17 = arith.constant dense<0.000000e+00> : vector<256xf32>
    %46 = vector.multi_reduction <add>, %45, %cst_17 [0] : vector<32x256xf32> to vector<256xf32>
    %47 = vector.shape_cast %46 : vector<256xf32> to vector<1x256xf32>
    %cst_18 = arith.constant 3.200000e+01 : f32
    %48 = vector.broadcast %cst_18 : f32 to vector<1x256xf32>
    %49 = arith.divf %47, %48 : vector<1x256xf32>
    %50 = vector.broadcast %49 : vector<1x256xf32> to vector<32x256xf32>
    %51 = arith.subf %45, %50 : vector<32x256xf32>
    %52 = vector.broadcast %49 : vector<1x256xf32> to vector<32x256xf32>
    %53 = arith.subf %45, %52 : vector<32x256xf32>
    %54 = arith.mulf %51, %53 : vector<32x256xf32>
    %cst_19 = arith.constant dense<0.000000e+00> : vector<256xf32>
    %55 = vector.multi_reduction <add>, %54, %cst_19 [0] : vector<32x256xf32> to vector<256xf32>
    %56 = vector.shape_cast %55 : vector<256xf32> to vector<1x256xf32>
    %cst_20 = arith.constant 3.200000e+01 : f32
    %57 = vector.broadcast %cst_20 : f32 to vector<1x256xf32>
    %58 = arith.divf %56, %57 : vector<1x256xf32>
    %59 = vector.broadcast %49 : vector<1x256xf32> to vector<32x256xf32>
    %60 = arith.subf %45, %59 : vector<32x256xf32>
    %cst_21 = arith.constant 9.99999974E-6 : f32
    %61 = vector.broadcast %cst_21 : f32 to vector<1x256xf32>
    %62 = arith.addf %58, %61 : vector<1x256xf32>
    %63 = math.rsqrt %62 : vector<1x256xf32>
    %64 = vector.broadcast %63 : vector<1x256xf32> to vector<32x256xf32>
    %65 = arith.mulf %60, %64 : vector<32x256xf32>
    %c0_22 = arith.constant 0 : index
    %c0_23 = arith.constant 0 : index
    %66 = vector.load %arg5[%c0_22, %c0_23] : memref<32x1xf32, #tpu.memory_space<vmem>>, vector<32x1xf32>
    %67 = vector.broadcast %66 : vector<32x1xf32> to vector<32x256xf32>
    %68 = arith.mulf %65, %67 : vector<32x256xf32>
    %c0_24 = arith.constant 0 : index
    %c0_25 = arith.constant 0 : index
    %c0_26 = arith.constant 0 : index
    %69 = vector.load %arg6[%c0_24, %c0_25, %c0_26] : memref<1x32x256xf32, #tpu.memory_space<vmem>>, vector<1x32x256xf32>
    %70 = vector.shape_cast %69 : vector<1x32x256xf32> to vector<32x256xf32>
    %71 = vector.shape_cast %68 : vector<32x256xf32> to vector<1x32x256xf32>
    tpu.vector_store %arg6[%c0_24, %c0_25, %c0_26], %71 {strides = array<i32>} : memref<1x32x256xf32, #tpu.memory_space<vmem>>, vector<1x32x256xf32>,
    return
  }
  func.func @transform_0(%arg0: i32) -> (i32, i32, i32) {
    %c0_i32 = arith.constant 0 : i32
    %c0_i32_0 = arith.constant 0 : i32
    %c0_i32_1 = arith.constant 0 : i32
    return %arg0, %c0_i32, %c0_i32_0 : i32, i32, i32
  }
  func.func @transform_1(%arg0: i32) -> (i32, i32) {
    %c0_i32 = arith.constant 0 : i32
    %c0_i32_0 = arith.constant 0 : i32
    %c0_i32_1 = arith.constant 0 : i32
    return %c0_i32, %c0_i32_0 : i32, i32
  }
  func.func @transform_2(%arg0: i32) -> (i32, i32) {
    %c0_i32 = arith.constant 0 : i32
    %c0_i32_0 = arith.constant 0 : i32
    %c0_i32_1 = arith.constant 0 : i32
    return %c0_i32, %c0_i32_0 : i32, i32
  }
  func.func @transform_3(%arg0: i32) -> (i32, i32) {
    %c0_i32 = arith.constant 0 : i32
    %c0_i32_0 = arith.constant 0 : i32
    %c0_i32_1 = arith.constant 0 : i32
    return %c0_i32, %c0_i32_0 : i32, i32
  }
  func.func @transform_4(%arg0: i32) -> (i32, i32) {
    %c0_i32 = arith.constant 0 : i32
    %c0_i32_0 = arith.constant 0 : i32
    %c0_i32_1 = arith.constant 0 : i32
    return %c0_i32, %c0_i32_0 : i32, i32
  }
  func.func @transform_5(%arg0: i32) -> (i32, i32, i32) {
    %c0_i32 = arith.constant 0 : i32
    %c0_i32_0 = arith.constant 0 : i32
    %c0_i32_1 = arith.constant 0 : i32
    return %arg0, %c0_i32, %c0_i32_0 : i32, i32, i32
  }
}

</mosaic_0001>

<llo_original>
// kernel: tpu_custom_call.1
$region0: #{tpu_custom_call.1}
  #allocation0 [shape = 'u32[]', space=smem, size = 0x4, offset = 0x4, fixed_abs, tag = 'smem constant byte address 0x4 - core index']
  #allocation1 [shape = 'u32[144,128]{1,0:T(1,128)}', space=vmem, size = 0x12000, scoped, tag = 'internal scratch']
  %s0 = inlined_call_operand.vmem [shape: f32[2,32,256], index: 0, kind: input, shape index: {}]
  %s1 = inlined_call_operand.vmem [shape: bf16[384,32], index: 1, kind: input, shape index: {}]
  %s2 = inlined_call_operand.vmem [shape: bf16[32,128], index: 2, kind: input, shape index: {}]
  %s3 = inlined_call_operand.vmem [shape: f32[32,1], index: 3, kind: input, shape index: {}]
  %s4 = inlined_call_operand.vmem [shape: f32[32,1], index: 4, kind: input, shape index: {}]
  %s5 = inlined_call_operand.hbm [shape: f32[2,32,256], index: 5, kind: output, shape index: {}]
  %s6 = sld [smem:[#allocation0]]
  $region53: #{tpu_custom_call.1} parent=0
    _
  %s8 = ssub.s32 1, %s6
  %s9 = scalar_select 0, %s8, %s6
  $region1: #{tpu_custom_call.1} parent=0
    #allocation2 [shape = 'u8[65536]{0}', space=vmem, size = 0x10000, scoped, tag = 'output window, operand 0']
    #allocation3 [shape = 's32[2]{0}', space=sflag, size = 0x8, scoped, tag = 'scoped memory for tpu_custom_call.1']
    %10 = vsyncpa [#allocation3], 0
    %s11 = scalar_lea.sflag [#allocation3], 1
    %12 = vsyncpa %s11, 0
    loop: start=0, step=1, limit=4
    $region2: #{tpu_custom_call.1} parent=1 // loop_pre_header
      _
    $region3: #{tpu_custom_call.1} parent=1 // loop_header
      %s14 = sphi 0, %s18
      %p15 = scmp.ge.s32.totalorder %s14, 4
      %s24 = sphi 0, %s26
      %s27 = sphi 0, %s24
      %s28 = sphi 0, %s27
      %s44 = sphi 0, %s28
      %s48 = sphi 0, %s48
      %s50 = sphi 0, %s48
      %s51 = sphi 0, %s50
      %s65 = sphi 0, %s51
      %s69 = sphi 0, %s69
      %s71 = sphi 0, %s69
      %s72 = sphi 0, %s71
      %s86 = sphi 0, %s72
      %s90 = sphi 0, %s90
      %s92 = sphi 0, %s90
      %s93 = sphi 0, %s92
      %s107 = sphi 0, %s93
      %s111 = sphi 0, %s111
      %s113 = sphi 0, %s111
      %s114 = sphi 0, %s113
      %s128 = sphi 0, %s114
      %s134 = sphi 0, %s136
      %s137 = sphi 0, %s134
      %s138 = sphi 0, %s137
      %s154 = sphi 0, %s138
    $region4: #{tpu_custom_call.1} parent=1 // loop_header_branch
      %17 = sbr.rel (%p15) target = $region8
    $region5: #{tpu_custom_call.1} parent=1 // loop_body
      %s19 = ssub.s32 %s14, 1
      %s20 = ssub.s32 %s14, 2
      %s21 = sadd.s32 %s14, 1
      %s22 = ssub.s32 %s14, %s21
      %p23 = scmp.eq.s32.totalorder %s22, 0
      %s25 = sadd.s32 %s24, 1
      %s26 = scalar_select %p23, %s24, %s25
      %p29 = pneg %p23
      %p30 = scmp.eq.s32.totalorder %s14, 1
      %p31 = por %p29, %p30
      %p32 = scmp.ne.s32.totalorder %s24, %s27
      %p33 = scmp.eq.s32.totalorder %s14, 0
      %p34 = por %p32, %p33
      %p35 = scmp.ne.s32.totalorder %s24, %s27
      %p36 = scmp.eq.s32.totalorder %s19, 1
      %p37 = por %p35, %p36
      %p38 = scmp.ne.s32.totalorder %s27, %s28
      %p39 = scmp.eq.s32.totalorder %s19, 0
      %p40 = por %p38, %p39
      %p41 = scmp.ne.s32.totalorder %s27, %s28
      %p42 = scmp.eq.s32.totalorder %s20, 1
      %p43 = por %p41, %p42
      %p45 = scmp.ne.s32.totalorder %s28, %s44
      %p46 = scmp.eq.s32.totalorder %s20, 0
      %p47 = por %p45, %p46
      %s49 = sadd.s32 %s48, 1
      %p52 = scmp.eq.s32.totalorder %s14, 1
      %p53 = scmp.ne.s32.totalorder %s48, %s50
      %p54 = scmp.eq.s32.totalorder %s14, 0
      %p55 = por %p53, %p54
      %p56 = scmp.ne.s32.totalorder %s48, %s50
      %p57 = scmp.eq.s32.totalorder %s19, 1
      %p58 = por %p56, %p57
      %p59 = scmp.ne.s32.totalorder %s50, %s51
      %p60 = scmp.eq.s32.totalorder %s19, 0
      %p61 = por %p59, %p60
      %p62 = scmp.ne.s32.totalorder %s50, %s51
      %p63 = scmp.eq.s32.totalorder %s20, 1
      %p64 = por %p62, %p63
      %p66 = scmp.ne.s32.totalorder %s51, %s65
      %p67 = scmp.eq.s32.totalorder %s20, 0
      %p68 = por %p66, %p67
      %s70 = sadd.s32 %s69, 1
      %p73 = scmp.eq.s32.totalorder %s14, 1
      %p74 = scmp.ne.s32.totalorder %s69, %s71
      %p75 = scmp.eq.s32.totalorder %s14, 0
      %p76 = por %p74, %p75
      %p77 = scmp.ne.s32.totalorder %s69, %s71
      %p78 = scmp.eq.s32.totalorder %s19, 1
      %p79 = por %p77, %p78
      %p80 = scmp.ne.s32.totalorder %s71, %s72
      %p81 = scmp.eq.s32.totalorder %s19, 0
      %p82 = por %p80, %p81
      %p83 = scmp.ne.s32.totalorder %s71, %s72
      %p84 = scmp.eq.s32.totalorder %s20, 1
      %p85 = por %p83, %p84
      %p87 = scmp.ne.s32.totalorder %s72, %s86
      %p88 = scmp.eq.s32.totalorder %s20, 0
      %p89 = por %p87, %p88
      %s91 = sadd.s32 %s90, 1
      %p94 = scmp.eq.s32.totalorder %s14, 1
      %p95 = scmp.ne.s32.totalorder %s90, %s92
      %p96 = scmp.eq.s32.totalorder %s14, 0
      %p97 = por %p95, %p96
      %p98 = scmp.ne.s32.totalorder %s90, %s92
      %p99 = scmp.eq.s32.totalorder %s19, 1
      %p100 = por %p98, %p99
      %p101 = scmp.ne.s32.totalorder %s92, %s93
      %p102 = scmp.eq.s32.totalorder %s19, 0
      %p103 = por %p101, %p102
      %p104 = scmp.ne.s32.totalorder %s92, %s93
      %p105 = scmp.eq.s32.totalorder %s20, 1
      %p106 = por %p104, %p105
      %p108 = scmp.ne.s32.totalorder %s93, %s107
      %p109 = scmp.eq.s32.totalorder %s20, 0
      %p110 = por %p108, %p109
      %s112 = sadd.s32 %s111, 1
      %p115 = scmp.eq.s32.totalorder %s14, 1
      %p116 = scmp.ne.s32.totalorder %s111, %s113
      %p117 = scmp.eq.s32.totalorder %s14, 0
      %p118 = por %p116, %p117
      %p119 = scmp.ne.s32.totalorder %s111, %s113
      %p120 = scmp.eq.s32.totalorder %s19, 1
      %p121 = por %p119, %p120
      %p122 = scmp.ne.s32.totalorder %s113, %s114
      %p123 = scmp.eq.s32.totalorder %s19, 0
      %p124 = por %p122, %p123
      %p125 = scmp.ne.s32.totalorder %s113, %s114
      %p126 = scmp.eq.s32.totalorder %s20, 1
      %p127 = por %p125, %p126
      %p129 = scmp.ne.s32.totalorder %s114, %s128
      %p130 = scmp.eq.s32.totalorder %s20, 0
      %p131 = por %p129, %p130
      %s132 = ssub.s32 %s14, %s21
      %p133 = scmp.eq.s32.totalorder %s132, 0
      %s135 = sadd.s32 %s134, 1
      %s136 = scalar_select %p133, %s134, %s135
      %p139 = pneg %p133
      %p140 = scmp.eq.s32.totalorder %s14, 1
      %p141 = por %p139, %p140
      %p142 = scmp.ne.s32.totalorder %s134, %s137
      %p143 = scmp.eq.s32.totalorder %s14, 0
      %p144 = por %p142, %p143
      %p145 = scmp.ne.s32.totalorder %s134, %s137
      %p146 = scmp.eq.s32.totalorder %s19, 1
      %p147 = por %p145, %p146
      %p148 = scmp.ne.s32.totalorder %s137, %s138
      %p149 = scmp.eq.s32.totalorder %s19, 0
      %p150 = por %p148, %p149
      %p151 = scmp.ne.s32.totalorder %s137, %s138
      %p152 = scmp.eq.s32.totalorder %s20, 1
      %p153 = por %p151, %p152
      %p155 = scmp.ne.s32.totalorder %s138, %s154
      %p156 = scmp.eq.s32.totalorder %s20, 0
      %p157 = por %p155, %p156
      %p158 = scmp.le.s32.totalorder 1, %s14
      %p159 = scmp.lt.s32.totalorder %s14, 3
      %p160 = pnand %p158, %p159
      %p161 = pneg %p160
      // Predicated region
      $region9: #{tpu_custom_call.1} parent=5 // pred_check
        _
      $region10: #{tpu_custom_call.1} parent=5 // pred_check_branch
        %163 = sbr.rel (%p160) target = $region12
      $region11: #{tpu_custom_call.1} parent=5 // pred_region
        %s164 = ssub.s32 %s14, 1
        // Predicated region
        $region13: #{tpu_custom_call.1} parent=11 // pred_check
          %p165 = pneg %p61
        $region14: #{tpu_custom_call.1} parent=11 // pred_check_branch
          %167 = sbr.rel (%p165) target = $region16
        $region15: #{tpu_custom_call.1} parent=11 // pred_region
          _
        $region16: #{tpu_custom_call.1} parent=11 // pred_fallthru
          _
        // Predicated region
        $region17: #{tpu_custom_call.1} parent=11 // pred_check
          %p168 = pneg %p82
        $region18: #{tpu_custom_call.1} parent=11 // pred_check_branch
          %170 = sbr.rel (%p168) target = $region20
        $region19: #{tpu_custom_call.1} parent=11 // pred_region
          _
        $region20: #{tpu_custom_call.1} parent=11 // pred_fallthru
          _
        // Predicated region
        $region21: #{tpu_custom_call.1} parent=11 // pred_check
          %p171 = pneg %p103
        $region22: #{tpu_custom_call.1} parent=11 // pred_check_branch
          %173 = sbr.rel (%p171) target = $region24
        $region23: #{tpu_custom_call.1} parent=11 // pred_region
          _
        $region24: #{tpu_custom_call.1} parent=11 // pred_fallthru
          _
        // Predicated region
        $region25: #{tpu_custom_call.1} parent=11 // pred_check
          %p174 = pneg %p124
        $region26: #{tpu_custom_call.1} parent=11 // pred_check_branch
          %176 = sbr.rel (%p174) target = $region28
        $region27: #{tpu_custom_call.1} parent=11 // pred_region
          _
        $region28: #{tpu_custom_call.1} parent=11 // pred_fallthru
          _
      $region12: #{tpu_custom_call.1} parent=5 // pred_fallthru
        _
      %p177 = scmp.lt.s32.totalorder %s14, 2
      // Predicated region
      $region29: #{tpu_custom_call.1} parent=5 // pred_check
        %p178 = pneg %p177
      $region30: #{tpu_custom_call.1} parent=5 // pred_check_branch
        %180 = sbr.rel (%p178) target = $region32
      $region31: #{tpu_custom_call.1} parent=5 // pred_region
        // Predicated region
        $region33: #{tpu_custom_call.1} parent=31 // pred_check
          %p181 = pneg %p34
        $region34: #{tpu_custom_call.1} parent=31 // pred_check_branch
          %183 = sbr.rel (%p181) target = $region36
        $region35: #{tpu_custom_call.1} parent=31 // pred_region
          %p184 = scmp.lt.s32.totalorder %s14, 1
          %s185 = scalar_select %p184, %s14, 1
          %s186 = smul.addr %s185, 8
          %s187 = smul.addr %s186, 8
          %s188 = scalar_lea.vmem %s0, %s187
        $region36: #{tpu_custom_call.1} parent=31 // pred_fallthru
          _
      $region32: #{tpu_custom_call.1} parent=5 // pred_fallthru
        _
      %p189 = scmp.le.s32.totalorder 1, %s14
      %p190 = scmp.lt.s32.totalorder %s14, 3
      %p191 = pnand %p189, %p190
      %p192 = pneg %p191
      // Predicated region
      $region37: #{tpu_custom_call.1} parent=5 // pred_check
        _
      $region38: #{tpu_custom_call.1} parent=5 // pred_check_branch
        %194 = sbr.rel (%p191) target = $region40
      $region39: #{tpu_custom_call.1} parent=5 // pred_region
        %s195 = ssub.s32 %s14, 1
        %p196 = scmp.lt.s32.totalorder %s19, 1
        %s197 = scalar_select %p196, %s19, 1
        %s198 = smul.addr %s197, 8
        %s199 = smul.addr %s198, 8
        %s200 = scalar_lea.vmem %s0, %s199
        %p201 = pneg %p40
        %p202 = pneg %p37
        %p203 = pneg %p61
        %p204 = pneg %p58
        %p205 = pneg %p82
        %p206 = pneg %p79
        %p207 = pneg %p103
        %p208 = pneg %p100
        %p209 = pneg %p124
        %p210 = pneg %p121
        %p211 = pneg %p150
        %p212 = pneg %p147
        %s213 = sand.u32 %s137, 1
        %s214 = scalar_lea.sflag [#allocation3], %s213
        %s215 = sand.u32 %s137, 1
        %s216 = smul.addr %s215, 64
        %s217 = scalar_lea.vmem [#allocation2], %s216
        %p218 = scmp.lt.s32.totalorder %s19, 1
        %s219 = scalar_select %p218, %s19, 1
        %s220 = smul.addr %s219, 8
        %s221 = smul.addr %s220, 8
        %s222 = scalar_lea.vmem %s0, %s221
        %v224 = vld [vmem:[%s222] sm:$0xff]
        %v225 = vld [vmem:[%s222 + $0x8] sm:$0xff]
        %v226 = vld [vmem:[%s222 + $0x10] sm:$0xff]
        %v227 = vld [vmem:[%s222 + $0x18] sm:$0xff]
        %v228 = vld [vmem:[%s222 + $0x20] sm:$0xff]
        %v229 = vld [vmem:[%s222 + $0x28] sm:$0xff]
        %v230 = vld [vmem:[%s222 + $0x30] sm:$0xff]
        %v231 = vld [vmem:[%s222 + $0x38] sm:$0xff]
        %v232 = vpack.c.bf16 %v226, %v224
        %v233 = vpack.c.bf16 %v227, %v225
        %v234 = vpack.c.bf16 %v230, %v228
        %v235 = vpack.c.bf16 %v231, %v229
        %v236 = vld [vmem:[%s1] sm:$0xf]
        %v237 = vld [vmem:[%s1 + $0x4] sm:$0xf]
        %v238 = vld [vmem:[%s1 + $0x8] sm:$0xf]
        %v239 = vld [vmem:[%s1 + $0xc] sm:$0xf]
        %v240 = vld [vmem:[%s1 + $0x10] sm:$0xf]
        %v241 = vld [vmem:[%s1 + $0x14] sm:$0xf]
        %v242 = vld [vmem:[%s1 + $0x18] sm:$0xf]
        %v243 = vld [vmem:[%s1 + $0x1c] sm:$0xf]
        %v244 = vld [vmem:[%s1 + $0x20] sm:$0xf]
        %v245 = vld [vmem:[%s1 + $0x24] sm:$0xf]
        %v246 = vld [vmem:[%s1 + $0x28] sm:$0xf]
        %v247 = vld [vmem:[%s1 + $0x2c] sm:$0xf]
        %v248 = vld [vmem:[%s1 + $0x30] sm:$0xf]
        %v249 = vld [vmem:[%s1 + $0x34] sm:$0xf]
        %v250 = vld [vmem:[%s1 + $0x38] sm:$0xf]
        %v251 = vld [vmem:[%s1 + $0x3c] sm:$0xf]
        %v252 = vld [vmem:[%s1 + $0x40] sm:$0xf]
        %v253 = vld [vmem:[%s1 + $0x44] sm:$0xf]
        %v254 = vld [vmem:[%s1 + $0x48] sm:$0xf]
        %v255 = vld [vmem:[%s1 + $0x4c] sm:$0xf]
        %v256 = vld [vmem:[%s1 + $0x50] sm:$0xf]
        %v257 = vld [vmem:[%s1 + $0x54] sm:$0xf]
        %v258 = vld [vmem:[%s1 + $0x58] sm:$0xf]
        %v259 = vld [vmem:[%s1 + $0x5c] sm:$0xf]
        %v260 = vld [vmem:[%s1 + $0x60] sm:$0xf]
        %v261 = vld [vmem:[%s1 + $0x64] sm:$0xf]
        %v262 = vld [vmem:[%s1 + $0x68] sm:$0xf]
        %v263 = vld [vmem:[%s1 + $0x6c] sm:$0xf]
        %v264 = vld [vmem:[%s1 + $0x70] sm:$0xf]
        %v265 = vld [vmem:[%s1 + $0x74] sm:$0xf]
        %v266 = vld [vmem:[%s1 + $0x78] sm:$0xf]
        %v267 = vld [vmem:[%s1 + $0x7c] sm:$0xf]
        %v268 = vld [vmem:[%s1 + $0x80] sm:$0xf]
        %v269 = vld [vmem:[%s1 + $0x84] sm:$0xf]
        %v270 = vld [vmem:[%s1 + $0x88] sm:$0xf]
        %v271 = vld [vmem:[%s1 + $0x8c] sm:$0xf]
        %v272 = vld [vmem:[%s1 + $0x90] sm:$0xf]
        %v273 = vld [vmem:[%s1 + $0x94] sm:$0xf]
        %v274 = vld [vmem:[%s1 + $0x98] sm:$0xf]
        %v275 = vld [vmem:[%s1 + $0x9c] sm:$0xf]
        %v276 = vld [vmem:[%s1 + $0xa0] sm:$0xf]
        %v277 = vld [vmem:[%s1 + $0xa4] sm:$0xf]
        %v278 = vld [vmem:[%s1 + $0xa8] sm:$0xf]
        %v279 = vld [vmem:[%s1 + $0xac] sm:$0xf]
        %v280 = vld [vmem:[%s1 + $0xb0] sm:$0xf]
        %v281 = vld [vmem:[%s1 + $0xb4] sm:$0xf]
        %v282 = vld [vmem:[%s1 + $0xb8] sm:$0xf]
        %v283 = vld [vmem:[%s1 + $0xbc] sm:$0xf]
        %v332 = vunpack.c.l.b16 %v236
        %v333 = vunpack.c.l.b16 %v237
        %v334 = vunpack.c.l.b16 %v238
        %v335 = vunpack.c.l.b16 %v239
        %v336 = vunpack.c.l.b16 %v240
        %v337 = vunpack.c.l.b16 %v241
        %v338 = vunpack.c.l.b16 %v242
        %v339 = vunpack.c.l.b16 %v243
        %v340 = vunpack.c.l.b16 %v244
        %v341 = vunpack.c.l.b16 %v245
        %v342 = vunpack.c.l.b16 %v246
        %v343 = vunpack.c.l.b16 %v247
        %v344 = vunpack.c.l.b16 %v248
        %v345 = vunpack.c.l.b16 %v249
        %v346 = vunpack.c.l.b16 %v250
        %v347 = vunpack.c.l.b16 %v251
        %v348 = vunpack.c.l.b16 %v252
        %v349 = vunpack.c.l.b16 %v253
        %v350 = vunpack.c.l.b16 %v254
        %v351 = vunpack.c.l.b16 %v255
        %v352 = vunpack.c.l.b16 %v256
        %v353 = vunpack.c.l.b16 %v257
        %v354 = vunpack.c.l.b16 %v258
        %v355 = vunpack.c.l.b16 %v259
        %v356 = vunpack.c.l.b16 %v260
        %v357 = vunpack.c.l.b16 %v261
        %v358 = vunpack.c.l.b16 %v262
        %v359 = vunpack.c.l.b16 %v263
        %v360 = vunpack.c.l.b16 %v264
        %v361 = vunpack.c.l.b16 %v265
        %v362 = vunpack.c.l.b16 %v266
        %v363 = vunpack.c.l.b16 %v267
        %v364 = vunpack.c.l.b16 %v268
        %v365 = vunpack.c.l.b16 %v269
        %v366 = vunpack.c.l.b16 %v270
        %v367 = vunpack.c.l.b16 %v271
        %v368 = vunpack.c.l.b16 %v272
        %v369 = vunpack.c.l.b16 %v273
        %v370 = vunpack.c.l.b16 %v274
        %v371 = vunpack.c.l.b16 %v275
        %v372 = vunpack.c.l.b16 %v276
        %v373 = vunpack.c.l.b16 %v277
        %v374 = vunpack.c.l.b16 %v278
        %v375 = vunpack.c.l.b16 %v279
        %v376 = vunpack.c.l.b16 %v280
        %v377 = vunpack.c.l.b16 %v281
        %v378 = vunpack.c.l.b16 %v282
        %v379 = vunpack.c.l.b16 %v283
        %v380 = vpack.c.b16 %v333, %v332
        %v381 = vpack.c.b16 %v335, %v334
        %v382 = vpack.c.b16 %v337, %v336
        %v383 = vpack.c.b16 %v339, %v338
        %v384 = vpack.c.b16 %v341, %v340
        %v385 = vpack.c.b16 %v343, %v342
        %v386 = vpack.c.b16 %v345, %v344
        %v387 = vpack.c.b16 %v347, %v346
        %v388 = vpack.c.b16 %v349, %v348
        %v389 = vpack.c.b16 %v351, %v350
        %v390 = vpack.c.b16 %v353, %v352
        %v391 = vpack.c.b16 %v355, %v354
        %v392 = vpack.c.b16 %v357, %v356
        %v393 = vpack.c.b16 %v359, %v358
        %v394 = vpack.c.b16 %v361, %v360
        %v395 = vpack.c.b16 %v363, %v362
        %v396 = vpack.c.b16 %v365, %v364
        %v397 = vpack.c.b16 %v367, %v366
        %v398 = vpack.c.b16 %v369, %v368
        %v399 = vpack.c.b16 %v371, %v370
        %v400 = vpack.c.b16 %v373, %v372
        %v401 = vpack.c.b16 %v375, %v374
        %v402 = vpack.c.b16 %v377, %v376
        %v403 = vpack.c.b16 %v379, %v378
        %vm404 = vcmask 261120
        %v406 = vsel %vm404, %v380, 0
        %v409 = vsel %vm404, %v381, 0
        %v412 = vsel %vm404, %v382, 0
        %v415 = vsel %vm404, %v383, 0
        %v418 = vsel %vm404, %v384, 0
        %v421 = vsel %vm404, %v385, 0
        %v424 = vsel %vm404, %v386, 0
        %v427 = vsel %vm404, %v387, 0
        %v430 = vsel %vm404, %v388, 0
        %v433 = vsel %vm404, %v389, 0
        %v436 = vsel %vm404, %v390, 0
        %v439 = vsel %vm404, %v391, 0
        %v442 = vsel %vm404, %v392, 0
        %v445 = vsel %vm404, %v393, 0
        %v448 = vsel %vm404, %v394, 0
        %v451 = vsel %vm404, %v395, 0
        %v454 = vsel %vm404, %v396, 0
        %v457 = vsel %vm404, %v397, 0
        %v460 = vsel %vm404, %v398, 0
        %v463 = vsel %vm404, %v399, 0
        %v466 = vsel %vm404, %v400, 0
        %v469 = vsel %vm404, %v401, 0
        %v472 = vsel %vm404, %v402, 0
        %v475 = vsel %vm404, %v403, 0
        %477 = vmatprep.subr.bf16.mxu0 %v233
        %478 = vmatpush1.bf16.msra.mxu0 %v232
        %479 = vmatprep.subr.bf16.mxu0 %v235
        %480 = vmatpush1.bf16.msra.mxu0 %v234
        %481 = vmatprep.subr.bf16.mxu0 0
        %482 = vmatpush1.bf16.msra.mxu0 0
        %483 = vmatprep.subr.bf16.mxu0 0
        %484 = vmatpush1.bf16.msra.mxu0 0
        %485 = vmatprep.subr.bf16.mxu0 0
        %486 = vmatpush1.bf16.msra.mxu0 0
        %487 = vmatprep.subr.bf16.mxu0 0
        %488 = vmatpush1.bf16.msra.mxu0 0
        %489 = vmatprep.subr.bf16.mxu0 0
        %490 = vmatpush1.bf16.msra.mxu0 0
        %491 = vmatprep.subr.bf16.mxu0 0
        %492 = vmatpush1.bf16.msra.mxu0 0
        %493 = vmatprep.subr.bf16.mxu0 0
        %494 = vmatpush1.bf16.msra.mxu0 0
        %495 = vmatprep.subr.bf16.mxu0 0
        %496 = vmatpush1.bf16.msra.mxu0 0
        %497 = vmatprep.subr.bf16.mxu0 0
        %498 = vmatpush1.bf16.msra.mxu0 0
        %499 = vmatprep.subr.bf16.mxu0 0
        %500 = vmatpush1.bf16.msra.mxu0 0
        %501 = vmatprep.subr.bf16.mxu0 0
        %502 = vmatpush1.bf16.msra.mxu0 0
        %503 = vmatprep.subr.bf16.mxu0 0
        %504 = vmatpush1.bf16.msra.mxu0 0
        %505 = vmatprep.subr.bf16.mxu0 0
        %506 = vmatpush1.bf16.msra.mxu0 0
        %507 = vmatprep.subr.bf16.mxu0 0
        %508 = vmatpush1.bf16.msra.mxu0 0
        %509 = vmatprep.mubr.bf16.mxu0 0
        %510 = vmatmul.mubr.bf16.gmra.mrb[0].mxu0 %v406
        %v511 = vpop.f32.mrb[0].mxu0
        %v512 = vadd.f32 0.0, %v511
        %v513 = vpop.f32.mrb[0].mxu0
        %v514 = vadd.f32 0.0, %v513
        %v515 = vpop.f32.mrb[0].mxu0
        %v516 = vadd.f32 0.0, %v515
        %v517 = vpop.f32.mrb[0].mxu0
        %v518 = vadd.f32 0.0, %v517
        %519 = vmatprep.mubr.bf16.mxu0 0
        %520 = vmatmul.mubr.bf16.gmra.mrb[0].mxu0 %v409
        %v521 = vpop.f32.mrb[0].mxu0
        %v522 = vadd.f32 0.0, %v521
        %v523 = vpop.f32.mrb[0].mxu0
        %v524 = vadd.f32 0.0, %v523
        %v525 = vpop.f32.mrb[0].mxu0
        %v526 = vadd.f32 0.0, %v525
        %v527 = vpop.f32.mrb[0].mxu0
        %v528 = vadd.f32 0.0, %v527
        %529 = vmatprep.mubr.bf16.mxu0 0
        %530 = vmatmul.mubr.bf16.gmra.mrb[0].mxu0 %v412
        %v531 = vpop.f32.mrb[0].mxu0
        %v532 = vadd.f32 0.0, %v531
        %v533 = vpop.f32.mrb[0].mxu0
        %v534 = vadd.f32 0.0, %v533
        %v535 = vpop.f32.mrb[0].mxu0
        %v536 = vadd.f32 0.0, %v535
        %v537 = vpop.f32.mrb[0].mxu0
        %v538 = vadd.f32 0.0, %v537
        %539 = vmatprep.mubr.bf16.mxu0 0
        %540 = vmatmul.mubr.bf16.gmra.mrb[0].mxu0 %v415
        %v541 = vpop.f32.mrb[0].mxu0
        %v542 = vadd.f32 0.0, %v541
        %v543 = vpop.f32.mrb[0].mxu0
        %v544 = vadd.f32 0.0, %v543
        %v545 = vpop.f32.mrb[0].mxu0
        %v546 = vadd.f32 0.0, %v545
        %v547 = vpop.f32.mrb[0].mxu0
        %v548 = vadd.f32 0.0, %v547
        %549 = vmatprep.mubr.bf16.mxu0 0
        %550 = vmatmul.mubr.bf16.gmra.mrb[0].mxu0 %v418
        %v551 = vpop.f32.mrb[0].mxu0
        %v552 = vadd.f32 0.0, %v551
        %v553 = vpop.f32.mrb[0].mxu0
        %v554 = vadd.f32 0.0, %v553
        %v555 = vpop.f32.mrb[0].mxu0
        %v556 = vadd.f32 0.0, %v555
        %v557 = vpop.f32.mrb[0].mxu0
        %v558 = vadd.f32 0.0, %v557
        %559 = vmatprep.mubr.bf16.mxu0 0
        %560 = vmatmul.mubr.bf16.gmra.mrb[0].mxu0 %v421
        %v561 = vpop.f32.mrb[0].mxu0
        %v562 = vadd.f32 0.0, %v561
        %v563 = vpop.f32.mrb[0].mxu0
        %v564 = vadd.f32 0.0, %v563
        %v565 = vpop.f32.mrb[0].mxu0
        %v566 = vadd.f32 0.0, %v565
        %v567 = vpop.f32.mrb[0].mxu0
        %v568 = vadd.f32 0.0, %v567
        %569 = vmatprep.mubr.bf16.mxu0 0
        %570 = vmatmul.mubr.bf16.gmra.mrb[0].mxu0 %v424
        %v571 = vpop.f32.mrb[0].mxu0
        %v572 = vadd.f32 0.0, %v571
        %v573 = vpop.f32.mrb[0].mxu0
        %v574 = vadd.f32 0.0, %v573
        %v575 = vpop.f32.mrb[0].mxu0
        %v576 = vadd.f32 0.0, %v575
        %v577 = vpop.f32.mrb[0].mxu0
        %v578 = vadd.f32 0.0, %v577
        %579 = vmatprep.mubr.bf16.mxu0 0
        %580 = vmatmul.mubr.bf16.gmra.mrb[0].mxu0 %v427
        %v581 = vpop.f32.mrb[0].mxu0
        %v582 = vadd.f32 0.0, %v581
        %v583 = vpop.f32.mrb[0].mxu0
        %v584 = vadd.f32 0.0, %v583
        %v585 = vpop.f32.mrb[0].mxu0
        %v586 = vadd.f32 0.0, %v585
        %v587 = vpop.f32.mrb[0].mxu0
        %v588 = vadd.f32 0.0, %v587
        %589 = vmatprep.mubr.bf16.mxu0 0
        %590 = vmatmul.mubr.bf16.gmra.mrb[0].mxu0 %v430
        %v591 = vpop.f32.mrb[0].mxu0
        %v592 = vadd.f32 0.0, %v591
        %v593 = vpop.f32.mrb[0].mxu0
        %v594 = vadd.f32 0.0, %v593
        %v595 = vpop.f32.mrb[0].mxu0
        %v596 = vadd.f32 0.0, %v595
        %v597 = vpop.f32.mrb[0].mxu0
        %v598 = vadd.f32 0.0, %v597
        %599 = vmatprep.mubr.bf16.mxu0 0
        %600 = vmatmul.mubr.bf16.gmra.mrb[0].mxu0 %v433
        %v601 = vpop.f32.mrb[0].mxu0
        %v602 = vadd.f32 0.0, %v601
        %v603 = vpop.f32.mrb[0].mxu0
        %v604 = vadd.f32 0.0, %v603
        %v605 = vpop.f32.mrb[0].mxu0
        %v606 = vadd.f32 0.0, %v605
        %v607 = vpop.f32.mrb[0].mxu0
        %v608 = vadd.f32 0.0, %v607
        %609 = vmatprep.mubr.bf16.mxu0 0
        %610 = vmatmul.mubr.bf16.gmra.mrb[0].mxu0 %v436
        %v611 = vpop.f32.mrb[0].mxu0
        %v612 = vadd.f32 0.0, %v611
        %v613 = vpop.f32.mrb[0].mxu0
        %v614 = vadd.f32 0.0, %v613
        %v615 = vpop.f32.mrb[0].mxu0
        %v616 = vadd.f32 0.0, %v615
        %v617 = vpop.f32.mrb[0].mxu0
        %v618 = vadd.f32 0.0, %v617
        %619 = vmatprep.mubr.bf16.mxu0 0
        %620 = vmatmul.mubr.bf16.gmra.mrb[0].mxu0 %v439
        %v621 = vpop.f32.mrb[0].mxu0
        %v622 = vadd.f32 0.0, %v621
        %v623 = vpop.f32.mrb[0].mxu0
        %v624 = vadd.f32 0.0, %v623
        %v625 = vpop.f32.mrb[0].mxu0
        %v626 = vadd.f32 0.0, %v625
        %v627 = vpop.f32.mrb[0].mxu0
        %v628 = vadd.f32 0.0, %v627
        %629 = vmatprep.mubr.bf16.mxu0 0
        %630 = vmatmul.mubr.bf16.gmra.mrb[0].mxu0 %v442
        %v631 = vpop.f32.mrb[0].mxu0
        %v632 = vadd.f32 0.0, %v631
        %v633 = vpop.f32.mrb[0].mxu0
        %v634 = vadd.f32 0.0, %v633
        %v635 = vpop.f32.mrb[0].mxu0
        %v636 = vadd.f32 0.0, %v635
        %v637 = vpop.f32.mrb[0].mxu0
        %v638 = vadd.f32 0.0, %v637
        %639 = vmatprep.mubr.bf16.mxu0 0
        %640 = vmatmul.mubr.bf16.gmra.mrb[0].mxu0 %v445
        %v641 = vpop.f32.mrb[0].mxu0
        %v642 = vadd.f32 0.0, %v641
        %v643 = vpop.f32.mrb[0].mxu0
        %v644 = vadd.f32 0.0, %v643
        %v645 = vpop.f32.mrb[0].mxu0
        %v646 = vadd.f32 0.0, %v645
        %v647 = vpop.f32.mrb[0].mxu0
        %v648 = vadd.f32 0.0, %v647
        %649 = vmatprep.mubr.bf16.mxu0 0
        %650 = vmatmul.mubr.bf16.gmra.mrb[0].mxu0 %v448
        %v651 = vpop.f32.mrb[0].mxu0
        %v652 = vadd.f32 0.0, %v651
        %v653 = vpop.f32.mrb[0].mxu0
        %v654 = vadd.f32 0.0, %v653
        %v655 = vpop.f32.mrb[0].mxu0
        %v656 = vadd.f32 0.0, %v655
        %v657 = vpop.f32.mrb[0].mxu0
        %v658 = vadd.f32 0.0, %v657
        %659 = vmatprep.mubr.bf16.mxu0 0
        %660 = vmatmul.mubr.bf16.gmra.mrb[0].mxu0 %v451
        %v661 = vpop.f32.mrb[0].mxu0
        %v662 = vadd.f32 0.0, %v661
        %v663 = vpop.f32.mrb[0].mxu0
        %v664 = vadd.f32 0.0, %v663
        %v665 = vpop.f32.mrb[0].mxu0
        %v666 = vadd.f32 0.0, %v665
        %v667 = vpop.f32.mrb[0].mxu0
        %v668 = vadd.f32 0.0, %v667
        %669 = vmatprep.mubr.bf16.mxu0 0
        %670 = vmatmul.mubr.bf16.gmra.mrb[0].mxu0 %v454
        %v671 = vpop.f32.mrb[0].mxu0
        %v672 = vadd.f32 0.0, %v671
        %v673 = vpop.f32.mrb[0].mxu0
        %v674 = vadd.f32 0.0, %v673
        %v675 = vpop.f32.mrb[0].mxu0
        %v676 = vadd.f32 0.0, %v675
        %v677 = vpop.f32.mrb[0].mxu0
        %v678 = vadd.f32 0.0, %v677
        %679 = vmatprep.mubr.bf16.mxu0 0
        %680 = vmatmul.mubr.bf16.gmra.mrb[0].mxu0 %v457
        %v681 = vpop.f32.mrb[0].mxu0
        %v682 = vadd.f32 0.0, %v681
        %v683 = vpop.f32.mrb[0].mxu0
        %v684 = vadd.f32 0.0, %v683
        %v685 = vpop.f32.mrb[0].mxu0
        %v686 = vadd.f32 0.0, %v685
        %v687 = vpop.f32.mrb[0].mxu0
        %v688 = vadd.f32 0.0, %v687
        %689 = vmatprep.mubr.bf16.mxu0 0
        %690 = vmatmul.mubr.bf16.gmra.mrb[0].mxu0 %v460
        %v691 = vpop.f32.mrb[0].mxu0
        %v692 = vadd.f32 0.0, %v691
        %v693 = vpop.f32.mrb[0].mxu0
        %v694 = vadd.f32 0.0, %v693
        %v695 = vpop.f32.mrb[0].mxu0
        %v696 = vadd.f32 0.0, %v695
        %v697 = vpop.f32.mrb[0].mxu0
        %v698 = vadd.f32 0.0, %v697
        %699 = vmatprep.mubr.bf16.mxu0 0
        %700 = vmatmul.mubr.bf16.gmra.mrb[0].mxu0 %v463
        %v701 = vpop.f32.mrb[0].mxu0
        %v702 = vadd.f32 0.0, %v701
        %v703 = vpop.f32.mrb[0].mxu0
        %v704 = vadd.f32 0.0, %v703
        %v705 = vpop.f32.mrb[0].mxu0
        %v706 = vadd.f32 0.0, %v705
        %v707 = vpop.f32.mrb[0].mxu0
        %v708 = vadd.f32 0.0, %v707
        %709 = vmatprep.mubr.bf16.mxu0 0
        %710 = vmatmul.mubr.bf16.gmra.mrb[0].mxu0 %v466
        %v711 = vpop.f32.mrb[0].mxu0
        %v712 = vadd.f32 0.0, %v711
        %v713 = vpop.f32.mrb[0].mxu0
        %v714 = vadd.f32 0.0, %v713
        %v715 = vpop.f32.mrb[0].mxu0
        %v716 = vadd.f32 0.0, %v715
        %v717 = vpop.f32.mrb[0].mxu0
        %v718 = vadd.f32 0.0, %v717
        %719 = vmatprep.mubr.bf16.mxu0 0
        %720 = vmatmul.mubr.bf16.gmra.mrb[0].mxu0 %v469
        %v721 = vpop.f32.mrb[0].mxu0
        %v722 = vadd.f32 0.0, %v721
        %v723 = vpop.f32.mrb[0].mxu0
        %v724 = vadd.f32 0.0, %v723
        %v725 = vpop.f32.mrb[0].mxu0
        %v726 = vadd.f32 0.0, %v725
        %v727 = vpop.f32.mrb[0].mxu0
        %v728 = vadd.f32 0.0, %v727
        %729 = vmatprep.mubr.bf16.mxu0 0
        %730 = vmatmul.mubr.bf16.gmra.mrb[0].mxu0 %v472
        %v731 = vpop.f32.mrb[0].mxu0
        %v732 = vadd.f32 0.0, %v731
        %v733 = vpop.f32.mrb[0].mxu0
        %v734 = vadd.f32 0.0, %v733
        %v735 = vpop.f32.mrb[0].mxu0
        %v736 = vadd.f32 0.0, %v735
        %v737 = vpop.f32.mrb[0].mxu0
        %v738 = vadd.f32 0.0, %v737
        %739 = vmatprep.mubr.bf16.mxu0 0
        %740 = vmatmul.mubr.bf16.gmra.mrb[0].mxu0 %v475
        %v741 = vpop.f32.mrb[0].mxu0
        %v742 = vadd.f32 0.0, %v741
        %v743 = vpop.f32.mrb[0].mxu0
        %v744 = vadd.f32 0.0, %v743
        %v745 = vpop.f32.mrb[0].mxu0
        %v746 = vadd.f32 0.0, %v745
        %v747 = vpop.f32.mrb[0].mxu0
        %v748 = vadd.f32 0.0, %v747
        %749 = vdwg.mxu0
        %v750 = vmax.f32 %v512, %v516
        %v751 = vmax.f32 %v750, %v522
        %v752 = vmax.f32 %v751, %v526
        %v753 = vrot.slane %v752, 4
        %v754 = vmax.f32 %v752, %v753
        %v755 = vrot.slane %v754, 2
        %v756 = vmax.f32 %v754, %v755
        %v757 = vrot.slane %v756, 1
        %v758 = vmax.f32 %v756, %v757
        %v759 = vmax.f32 %v514, %v518
        %v760 = vmax.f32 %v759, %v524
        %v761 = vmax.f32 %v760, %v528
        %v762 = vrot.slane %v761, 4
        %v763 = vmax.f32 %v761, %v762
        %v764 = vrot.slane %v763, 2
        %v765 = vmax.f32 %v763, %v764
        %v766 = vrot.slane %v765, 1
        %v767 = vmax.f32 %v765, %v766
        %v768 = vmax.f32 %v532, %v536
        %v769 = vmax.f32 %v768, %v542
        %v770 = vmax.f32 %v769, %v546
        %v771 = vrot.slane %v770, 4
        %v772 = vmax.f32 %v770, %v771
        %v773 = vrot.slane %v772, 2
        %v774 = vmax.f32 %v772, %v773
        %v775 = vrot.slane %v774, 1
        %v776 = vmax.f32 %v774, %v775
        %v777 = vmax.f32 %v534, %v538
        %v778 = vmax.f32 %v777, %v544
        %v779 = vmax.f32 %v778, %v548
        %v780 = vrot.slane %v779, 4
        %v781 = vmax.f32 %v779, %v780
        %v782 = vrot.slane %v781, 2
        %v783 = vmax.f32 %v781, %v782
        %v784 = vrot.slane %v783, 1
        %v785 = vmax.f32 %v783, %v784
        %v786 = vmax.f32 %v552, %v556
        %v787 = vmax.f32 %v786, %v562
        %v788 = vmax.f32 %v787, %v566
        %v789 = vrot.slane %v788, 4
        %v790 = vmax.f32 %v788, %v789
        %v791 = vrot.slane %v790, 2
        %v792 = vmax.f32 %v790, %v791
        %v793 = vrot.slane %v792, 1
        %v794 = vmax.f32 %v792, %v793
        %v795 = vmax.f32 %v554, %v558
        %v796 = vmax.f32 %v795, %v564
        %v797 = vmax.f32 %v796, %v568
        %v798 = vrot.slane %v797, 4
        %v799 = vmax.f32 %v797, %v798
        %v800 = vrot.slane %v799, 2
        %v801 = vmax.f32 %v799, %v800
        %v802 = vrot.slane %v801, 1
        %v803 = vmax.f32 %v801, %v802
        %v804 = vmax.f32 %v572, %v576
        %v805 = vmax.f32 %v804, %v582
        %v806 = vmax.f32 %v805, %v586
        %v807 = vrot.slane %v806, 4
        %v808 = vmax.f32 %v806, %v807
        %v809 = vrot.slane %v808, 2
        %v810 = vmax.f32 %v808, %v809
        %v811 = vrot.slane %v810, 1
        %v812 = vmax.f32 %v810, %v811
        %v813 = vmax.f32 %v574, %v578
        %v814 = vmax.f32 %v813, %v584
        %v815 = vmax.f32 %v814, %v588
        %v816 = vrot.slane %v815, 4
        %v817 = vmax.f32 %v815, %v816
        %v818 = vrot.slane %v817, 2
        %v819 = vmax.f32 %v817, %v818
        %v820 = vrot.slane %v819, 1
        %v821 = vmax.f32 %v819, %v820
        %v822 = vsub.f32 %v512, %v758
        %v823 = vsub.f32 %v514, %v767
        %v824 = vsub.f32 %v516, %v758
        %v825 = vsub.f32 %v518, %v767
        %v826 = vsub.f32 %v522, %v758
        %v827 = vsub.f32 %v524, %v767
        %v828 = vsub.f32 %v526, %v758
        %v829 = vsub.f32 %v528, %v767
        %v830 = vsub.f32 %v532, %v776
        %v831 = vsub.f32 %v534, %v785
        %v832 = vsub.f32 %v536, %v776
        %v833 = vsub.f32 %v538, %v785
        %v834 = vsub.f32 %v542, %v776
        %v835 = vsub.f32 %v544, %v785
        %v836 = vsub.f32 %v546, %v776
        %v837 = vsub.f32 %v548, %v785
        %v838 = vsub.f32 %v552, %v794
        %v839 = vsub.f32 %v554, %v803
        %v840 = vsub.f32 %v556, %v794
        %v841 = vsub.f32 %v558, %v803
        %v842 = vsub.f32 %v562, %v794
        %v843 = vsub.f32 %v564, %v803
        %v844 = vsub.f32 %v566, %v794
        %v845 = vsub.f32 %v568, %v803
        %v846 = vsub.f32 %v572, %v812
        %v847 = vsub.f32 %v574, %v821
        %v848 = vsub.f32 %v576, %v812
        %v849 = vsub.f32 %v578, %v821
        %v850 = vsub.f32 %v582, %v812
        %v851 = vsub.f32 %v584, %v821
        %v852 = vsub.f32 %v586, %v812
        %v853 = vsub.f32 %v588, %v821
        %v854 = vmul.f32 %v822, 1.442695
        %v855 = vpow.pop %v854
        %v856 = vmul.f32 %v823, 1.442695
        %v857 = vpow.pop %v856
        %v858 = vmul.f32 %v824, 1.442695
        %v859 = vpow.pop %v858
        %v860 = vmul.f32 %v825, 1.442695
        %v861 = vpow.pop %v860
        %v862 = vmul.f32 %v826, 1.442695
        %v863 = vpow.pop %v862
        %v864 = vmul.f32 %v827, 1.442695
        %v865 = vpow.pop %v864
        %v866 = vmul.f32 %v828, 1.442695
        %v867 = vpow.pop %v866
        %v868 = vmul.f32 %v829, 1.442695
        %v869 = vpow.pop %v868
        %v870 = vmul.f32 %v830, 1.442695
        %v871 = vpow.pop %v870
        %v872 = vmul.f32 %v831, 1.442695
        %v873 = vpow.pop %v872
        %v874 = vmul.f32 %v832, 1.442695
        %v875 = vpow.pop %v874
        %v876 = vmul.f32 %v833, 1.442695
        %v877 = vpow.pop %v876
        %v878 = vmul.f32 %v834, 1.442695
        %v879 = vpow.pop %v878
        %v880 = vmul.f32 %v835, 1.442695
        %v881 = vpow.pop %v880
        %v882 = vmul.f32 %v836, 1.442695
        %v883 = vpow.pop %v882
        %v884 = vmul.f32 %v837, 1.442695
        %v885 = vpow.pop %v884
        %v886 = vmul.f32 %v838, 1.442695
        %v887 = vpow.pop %v886
        %v888 = vmul.f32 %v839, 1.442695
        %v889 = vpow.pop %v888
        %v890 = vmul.f32 %v840, 1.442695
        %v891 = vpow.pop %v890
        %v892 = vmul.f32 %v841, 1.442695
        %v893 = vpow.pop %v892
        %v894 = vmul.f32 %v842, 1.442695
        %v895 = vpow.pop %v894
        %v896 = vmul.f32 %v843, 1.442695
        %v897 = vpow.pop %v896
        %v898 = vmul.f32 %v844, 1.442695
        %v899 = vpow.pop %v898
        %v900 = vmul.f32 %v845, 1.442695
        %v901 = vpow.pop %v900
        %v902 = vmul.f32 %v846, 1.442695
        %v903 = vpow.pop %v902
        %v904 = vmul.f32 %v847, 1.442695
        %v905 = vpow.pop %v904
        %v906 = vmul.f32 %v848, 1.442695
        %v907 = vpow.pop %v906
        %v908 = vmul.f32 %v849, 1.442695
        %v909 = vpow.pop %v908
        %v910 = vmul.f32 %v850, 1.442695
        %v911 = vpow.pop %v910
        %v912 = vmul.f32 %v851, 1.442695
        %v913 = vpow.pop %v912
        %v914 = vmul.f32 %v852, 1.442695
        %v915 = vpow.pop %v914
        %v916 = vmul.f32 %v853, 1.442695
        %v917 = vpow.pop %v916
        %v918 = vadd.f32 %v855, %v859
        %v919 = vadd.f32 %v918, %v863
        %v920 = vadd.f32 %v919, %v867
        %v921 = vrot.slane %v920, 4
        %v922 = vadd.f32 %v920, %v921
        %v923 = vrot.slane %v922, 2
        %v924 = vadd.f32 %v922, %v923
        %v925 = vrot.slane %v924, 1
        %v926 = vadd.f32 %v924, %v925
        %v927 = vadd.f32 %v857, %v861
        %v928 = vadd.f32 %v927, %v865
        %v929 = vadd.f32 %v928, %v869
        %v930 = vrot.slane %v929, 4
        %v931 = vadd.f32 %v929, %v930
        %v932 = vrot.slane %v931, 2
        %v933 = vadd.f32 %v931, %v932
        %v934 = vrot.slane %v933, 1
        %v935 = vadd.f32 %v933, %v934
        %v936 = vadd.f32 %v871, %v875
        %v937 = vadd.f32 %v936, %v879
        %v938 = vadd.f32 %v937, %v883
        %v939 = vrot.slane %v938, 4
        %v940 = vadd.f32 %v938, %v939
        %v941 = vrot.slane %v940, 2
        %v942 = vadd.f32 %v940, %v941
        %v943 = vrot.slane %v942, 1
        %v944 = vadd.f32 %v942, %v943
        %v945 = vadd.f32 %v873, %v877
        %v946 = vadd.f32 %v945, %v881
        %v947 = vadd.f32 %v946, %v885
        %v948 = vrot.slane %v947, 4
        %v949 = vadd.f32 %v947, %v948
        %v950 = vrot.slane %v949, 2
        %v951 = vadd.f32 %v949, %v950
        %v952 = vrot.slane %v951, 1
        %v953 = vadd.f32 %v951, %v952
        %v954 = vadd.f32 %v887, %v891
        %v955 = vadd.f32 %v954, %v895
        %v956 = vadd.f32 %v955, %v899
        %v957 = vrot.slane %v956, 4
        %v958 = vadd.f32 %v956, %v957
        %v959 = vrot.slane %v958, 2
        %v960 = vadd.f32 %v958, %v959
        %v961 = vrot.slane %v960, 1
        %v962 = vadd.f32 %v960, %v961
        %v963 = vadd.f32 %v889, %v893
        %v964 = vadd.f32 %v963, %v897
        %v965 = vadd.f32 %v964, %v901
        %v966 = vrot.slane %v965, 4
        %v967 = vadd.f32 %v965, %v966
        %v968 = vrot.slane %v967, 2
        %v969 = vadd.f32 %v967, %v968
        %v970 = vrot.slane %v969, 1
        %v971 = vadd.f32 %v969, %v970
        %v972 = vadd.f32 %v903, %v907
        %v973 = vadd.f32 %v972, %v911
        %v974 = vadd.f32 %v973, %v915
        %v975 = vrot.slane %v974, 4
        %v976 = vadd.f32 %v974, %v975
        %v977 = vrot.slane %v976, 2
        %v978 = vadd.f32 %v976, %v977
        %v979 = vrot.slane %v978, 1
        %v980 = vadd.f32 %v978, %v979
        %v981 = vadd.f32 %v905, %v909
        %v982 = vadd.f32 %v981, %v913
        %v983 = vadd.f32 %v982, %v917
        %v984 = vrot.slane %v983, 4
        %v985 = vadd.f32 %v983, %v984
        %v986 = vrot.slane %v985, 2
        %v987 = vadd.f32 %v985, %v986
        %v988 = vrot.slane %v987, 1
        %v989 = vadd.f32 %v987, %v988
        %v990 = vrcp.pop %v926
        %v991 = vrcp.pop %v935
        %v992 = vrcp.pop %v944
        %v993 = vrcp.pop %v953
        %v994 = vrcp.pop %v962
        %v995 = vrcp.pop %v971
        %v996 = vrcp.pop %v980
        %v997 = vrcp.pop %v989
        %v998 = vmul.f32 %v990, 0.17677669
        %v999 = vmul.f32 %v991, 0.17677669
        %v1000 = vmul.f32 %v992, 0.17677669
        %v1001 = vmul.f32 %v993, 0.17677669
        %v1002 = vmul.f32 %v994, 0.17677669
        %v1003 = vmul.f32 %v995, 0.17677669
        %v1004 = vmul.f32 %v996, 0.17677669
        %v1005 = vmul.f32 %v997, 0.17677669
        %v1006 = vmul.f32 %v855, %v998
        %v1007 = vmul.f32 %v857, %v999
        %v1008 = vmul.f32 %v859, %v998
        %v1009 = vmul.f32 %v861, %v999
        %v1010 = vmul.f32 %v863, %v998
        %v1011 = vmul.f32 %v865, %v999
        %v1012 = vmul.f32 %v867, %v998
        %v1013 = vmul.f32 %v869, %v999
        %v1014 = vmul.f32 %v871, %v1000
        %v1015 = vmul.f32 %v873, %v1001
        %v1016 = vmul.f32 %v875, %v1000
        %v1017 = vmul.f32 %v877, %v1001
        %v1018 = vmul.f32 %v879, %v1000
        %v1019 = vmul.f32 %v881, %v1001
        %v1020 = vmul.f32 %v883, %v1000
        %v1021 = vmul.f32 %v885, %v1001
        %v1022 = vmul.f32 %v887, %v1002
        %v1023 = vmul.f32 %v889, %v1003
        %v1024 = vmul.f32 %v891, %v1002
        %v1025 = vmul.f32 %v893, %v1003
        %v1026 = vmul.f32 %v895, %v1002
        %v1027 = vmul.f32 %v897, %v1003
        %v1028 = vmul.f32 %v899, %v1002
        %v1029 = vmul.f32 %v901, %v1003
        %v1030 = vmul.f32 %v903, %v1004
        %v1031 = vmul.f32 %v905, %v1005
        %v1032 = vmul.f32 %v907, %v1004
        %v1033 = vmul.f32 %v909, %v1005
        %v1034 = vmul.f32 %v911, %v1004
        %v1035 = vmul.f32 %v913, %v1005
        %v1036 = vmul.f32 %v915, %v1004
        %v1037 = vmul.f32 %v917, %v1005
        %v1038 = vmax.f32 %v592, %v594
        %1039 = vmax.xlane.f32.xlu0 %v1038
        %v1040 = vpop.xlane.xlu0 %1039
        %v1041 = vmax.f32 %v596, %v598
        %1042 = vmax.xlane.f32.xlu0 %v1041
        %v1043 = vpop.xlane.xlu0 %1042
        %v1044 = vmax.f32 %v602, %v604
        %1045 = vmax.xlane.f32.xlu0 %v1044
        %v1046 = vpop.xlane.xlu0 %1045
        %v1047 = vmax.f32 %v606, %v608
        %1048 = vmax.xlane.f32.xlu0 %v1047
        %v1049 = vpop.xlane.xlu0 %1048
        %v1050 = vmax.f32 %v612, %v614
        %1051 = vmax.xlane.f32.xlu0 %v1050
        %v1052 = vpop.xlane.xlu0 %1051
        %v1053 = vmax.f32 %v616, %v618
        %1054 = vmax.xlane.f32.xlu0 %v1053
        %v1055 = vpop.xlane.xlu0 %1054
        %v1056 = vmax.f32 %v622, %v624
        %1057 = vmax.xlane.f32.xlu0 %v1056
        %v1058 = vpop.xlane.xlu0 %1057
        %v1059 = vmax.f32 %v626, %v628
        %1060 = vmax.xlane.f32.xlu0 %v1059
        %v1061 = vpop.xlane.xlu0 %1060
        %v1062 = vmax.f32 %v632, %v634
        %1063 = vmax.xlane.f32.xlu0 %v1062
        %v1064 = vpop.xlane.xlu0 %1063
        %v1065 = vmax.f32 %v636, %v638
        %1066 = vmax.xlane.f32.xlu0 %v1065
        %v1067 = vpop.xlane.xlu0 %1066
        %v1068 = vmax.f32 %v642, %v644
        %1069 = vmax.xlane.f32.xlu0 %v1068
        %v1070 = vpop.xlane.xlu0 %1069
        %v1071 = vmax.f32 %v646, %v648
        %1072 = vmax.xlane.f32.xlu0 %v1071
        %v1073 = vpop.xlane.xlu0 %1072
        %v1074 = vmax.f32 %v652, %v654
        %1075 = vmax.xlane.f32.xlu0 %v1074
        %v1076 = vpop.xlane.xlu0 %1075
        %v1077 = vmax.f32 %v656, %v658
        %1078 = vmax.xlane.f32.xlu0 %v1077
        %v1079 = vpop.xlane.xlu0 %1078
        %v1080 = vmax.f32 %v662, %v664
        %1081 = vmax.xlane.f32.xlu0 %v1080
        %v1082 = vpop.xlane.xlu0 %1081
        %v1083 = vmax.f32 %v666, %v668
        %1084 = vmax.xlane.f32.xlu0 %v1083
        %v1085 = vpop.xlane.xlu0 %1084
        %v1086 = vsub.f32 %v592, %v1040
        %v1087 = vsub.f32 %v594, %v1040
        %v1088 = vsub.f32 %v596, %v1043
        %v1089 = vsub.f32 %v598, %v1043
        %v1090 = vsub.f32 %v602, %v1046
        %v1091 = vsub.f32 %v604, %v1046
        %v1092 = vsub.f32 %v606, %v1049
        %v1093 = vsub.f32 %v608, %v1049
        %v1094 = vsub.f32 %v612, %v1052
        %v1095 = vsub.f32 %v614, %v1052
        %v1096 = vsub.f32 %v616, %v1055
        %v1097 = vsub.f32 %v618, %v1055
        %v1098 = vsub.f32 %v622, %v1058
        %v1099 = vsub.f32 %v624, %v1058
        %v1100 = vsub.f32 %v626, %v1061
        %v1101 = vsub.f32 %v628, %v1061
        %v1102 = vsub.f32 %v632, %v1064
        %v1103 = vsub.f32 %v634, %v1064
        %v1104 = vsub.f32 %v636, %v1067
        %v1105 = vsub.f32 %v638, %v1067
        %v1106 = vsub.f32 %v642, %v1070
        %v1107 = vsub.f32 %v644, %v1070
        %v1108 = vsub.f32 %v646, %v1073
        %v1109 = vsub.f32 %v648, %v1073
        %v1110 = vsub.f32 %v652, %v1076
        %v1111 = vsub.f32 %v654, %v1076
        %v1112 = vsub.f32 %v656, %v1079
        %v1113 = vsub.f32 %v658, %v1079
        %v1114 = vsub.f32 %v662, %v1082
        %v1115 = vsub.f32 %v664, %v1082
        %v1116 = vsub.f32 %v666, %v1085
        %v1117 = vsub.f32 %v668, %v1085
        %v1118 = vmul.f32 %v1086, 1.442695
        %v1119 = vpow.pop %v1118
        %v1120 = vmul.f32 %v1087, 1.442695
        %v1121 = vpow.pop %v1120
        %v1122 = vmul.f32 %v1088, 1.442695
        %v1123 = vpow.pop %v1122
        %v1124 = vmul.f32 %v1089, 1.442695
        %v1125 = vpow.pop %v1124
        %v1126 = vmul.f32 %v1090, 1.442695
        %v1127 = vpow.pop %v1126
        %v1128 = vmul.f32 %v1091, 1.442695
        %v1129 = vpow.pop %v1128
        %v1130 = vmul.f32 %v1092, 1.442695
        %v1131 = vpow.pop %v1130
        %v1132 = vmul.f32 %v1093, 1.442695
        %v1133 = vpow.pop %v1132
        %v1134 = vmul.f32 %v1094, 1.442695
        %v1135 = vpow.pop %v1134
        %v1136 = vmul.f32 %v1095, 1.442695
        %v1137 = vpow.pop %v1136
        %v1138 = vmul.f32 %v1096, 1.442695
        %v1139 = vpow.pop %v1138
        %v1140 = vmul.f32 %v1097, 1.442695
        %v1141 = vpow.pop %v1140
        %v1142 = vmul.f32 %v1098, 1.442695
        %v1143 = vpow.pop %v1142
        %v1144 = vmul.f32 %v1099, 1.442695
        %v1145 = vpow.pop %v1144
        %v1146 = vmul.f32 %v1100, 1.442695
        %v1147 = vpow.pop %v1146
        %v1148 = vmul.f32 %v1101, 1.442695
        %v1149 = vpow.pop %v1148
        %v1150 = vmul.f32 %v1102, 1.442695
        %v1151 = vpow.pop %v1150
        %v1152 = vmul.f32 %v1103, 1.442695
        %v1153 = vpow.pop %v1152
        %v1154 = vmul.f32 %v1104, 1.442695
        %v1155 = vpow.pop %v1154
        %v1156 = vmul.f32 %v1105, 1.442695
        %v1157 = vpow.pop %v1156
        %v1158 = vmul.f32 %v1106, 1.442695
        %v1159 = vpow.pop %v1158
        %v1160 = vmul.f32 %v1107, 1.442695
        %v1161 = vpow.pop %v1160
        %v1162 = vmul.f32 %v1108, 1.442695
        %v1163 = vpow.pop %v1162
        %v1164 = vmul.f32 %v1109, 1.442695
        %v1165 = vpow.pop %v1164
        %v1166 = vmul.f32 %v1110, 1.442695
        %v1167 = vpow.pop %v1166
        %v1168 = vmul.f32 %v1111, 1.442695
        %v1169 = vpow.pop %v1168
        %v1170 = vmul.f32 %v1112, 1.442695
        %v1171 = vpow.pop %v1170
        %v1172 = vmul.f32 %v1113, 1.442695
        %v1173 = vpow.pop %v1172
        %v1174 = vmul.f32 %v1114, 1.442695
        %v1175 = vpow.pop %v1174
        %v1176 = vmul.f32 %v1115, 1.442695
        %v1177 = vpow.pop %v1176
        %v1178 = vmul.f32 %v1116, 1.442695
        %v1179 = vpow.pop %v1178
        %v1180 = vmul.f32 %v1117, 1.442695
        %v1181 = vpow.pop %v1180
        %v1182 = vadd.f32 %v1119, %v1121
        %1183 = vadd.xlane.f32.xlu0 %v1182
        %v1184 = vpop.xlane.xlu0 %1183
        %v1185 = vadd.f32 %v1123, %v1125
        %1186 = vadd.xlane.f32.xlu0 %v1185
        %v1187 = vpop.xlane.xlu0 %1186
        %v1188 = vadd.f32 %v1127, %v1129
        %1189 = vadd.xlane.f32.xlu0 %v1188
        %v1190 = vpop.xlane.xlu0 %1189
        %v1191 = vadd.f32 %v1131, %v1133
        %1192 = vadd.xlane.f32.xlu0 %v1191
        %v1193 = vpop.xlane.xlu0 %1192
        %v1194 = vadd.f32 %v1135, %v1137
        %1195 = vadd.xlane.f32.xlu0 %v1194
        %v1196 = vpop.xlane.xlu0 %1195
        %v1197 = vadd.f32 %v1139, %v1141
        %1198 = vadd.xlane.f32.xlu0 %v1197
        %v1199 = vpop.xlane.xlu0 %1198
        %v1200 = vadd.f32 %v1143, %v1145
        %1201 = vadd.xlane.f32.xlu0 %v1200
        %v1202 = vpop.xlane.xlu0 %1201
        %v1203 = vadd.f32 %v1147, %v1149
        %1204 = vadd.xlane.f32.xlu0 %v1203
        %v1205 = vpop.xlane.xlu0 %1204
        %v1206 = vadd.f32 %v1151, %v1153
        %1207 = vadd.xlane.f32.xlu0 %v1206
        %v1208 = vpop.xlane.xlu0 %1207
        %v1209 = vadd.f32 %v1155, %v1157
        %1210 = vadd.xlane.f32.xlu0 %v1209
        %v1211 = vpop.xlane.xlu0 %1210
        %v1212 = vadd.f32 %v1159, %v1161
        %1213 = vadd.xlane.f32.xlu0 %v1212
        %v1214 = vpop.xlane.xlu0 %1213
        %v1215 = vadd.f32 %v1163, %v1165
        %1216 = vadd.xlane.f32.xlu0 %v1215
        %v1217 = vpop.xlane.xlu0 %1216
        %v1218 = vadd.f32 %v1167, %v1169
        %1219 = vadd.xlane.f32.xlu0 %v1218
        %v1220 = vpop.xlane.xlu0 %1219
        %v1221 = vadd.f32 %v1171, %v1173
        %1222 = vadd.xlane.f32.xlu0 %v1221
        %v1223 = vpop.xlane.xlu0 %1222
        %v1224 = vadd.f32 %v1175, %v1177
        %1225 = vadd.xlane.f32.xlu0 %v1224
        %v1226 = vpop.xlane.xlu0 %1225
        %v1227 = vadd.f32 %v1179, %v1181
        %1228 = vadd.xlane.f32.xlu0 %v1227
        %v1229 = vpop.xlane.xlu0 %1228
        %v1230 = vrcp.pop %v1184
        %v1231 = vrcp.pop %v1187
        %v1232 = vrcp.pop %v1190
        %v1233 = vrcp.pop %v1193
        %v1234 = vrcp.pop %v1196
        %v1235 = vrcp.pop %v1199
        %v1236 = vrcp.pop %v1202
        %v1237 = vrcp.pop %v1205
        %v1238 = vrcp.pop %v1208
        %v1239 = vrcp.pop %v1211
        %v1240 = vrcp.pop %v1214
        %v1241 = vrcp.pop %v1217
        %v1242 = vrcp.pop %v1220
        %v1243 = vrcp.pop %v1223
        %v1244 = vrcp.pop %v1226
        %v1245 = vrcp.pop %v1229
        %v1246 = vmul.f32 %v1119, %v1230
        %v1247 = vmul.f32 %v1121, %v1230
        %v1248 = vmul.f32 %v1123, %v1231
        %v1249 = vmul.f32 %v1125, %v1231
        %v1250 = vmul.f32 %v1127, %v1232
        %v1251 = vmul.f32 %v1129, %v1232
        %v1252 = vmul.f32 %v1131, %v1233
        %v1253 = vmul.f32 %v1133, %v1233
        %v1254 = vmul.f32 %v1135, %v1234
        %v1255 = vmul.f32 %v1137, %v1234
        %v1256 = vmul.f32 %v1139, %v1235
        %v1257 = vmul.f32 %v1141, %v1235
        %v1258 = vmul.f32 %v1143, %v1236
        %v1259 = vmul.f32 %v1145, %v1236
        %v1260 = vmul.f32 %v1147, %v1237
        %v1261 = vmul.f32 %v1149, %v1237
        %v1262 = vmul.f32 %v1151, %v1238
        %v1263 = vmul.f32 %v1153, %v1238
        %v1264 = vmul.f32 %v1155, %v1239
        %v1265 = vmul.f32 %v1157, %v1239
        %v1266 = vmul.f32 %v1159, %v1240
        %v1267 = vmul.f32 %v1161, %v1240
        %v1268 = vmul.f32 %v1163, %v1241
        %v1269 = vmul.f32 %v1165, %v1241
        %v1270 = vmul.f32 %v1167, %v1242
        %v1271 = vmul.f32 %v1169, %v1242
        %v1272 = vmul.f32 %v1171, %v1243
        %v1273 = vmul.f32 %v1173, %v1243
        %v1274 = vmul.f32 %v1175, %v1244
        %v1275 = vmul.f32 %v1177, %v1244
        %v1276 = vmul.f32 %v1179, %v1245
        %v1277 = vmul.f32 %v1181, %v1245
        %v1278 = vpack.c.bf16 %v676, %v672
        %v1279 = vpack.c.bf16 %v678, %v674
        %v1280 = vpack.c.bf16 %v686, %v682
        %v1281 = vpack.c.bf16 %v688, %v684
        %v1282 = vpack.c.bf16 %v696, %v692
        %v1283 = vpack.c.bf16 %v698, %v694
        %v1284 = vpack.c.bf16 %v706, %v702
        %v1285 = vpack.c.bf16 %v708, %v704
        %v1286 = vpack.c.bf16 %v716, %v712
        %v1287 = vpack.c.bf16 %v718, %v714
        %v1288 = vpack.c.bf16 %v726, %v722
        %v1289 = vpack.c.bf16 %v728, %v724
        %v1290 = vpack.c.bf16 %v736, %v732
        %v1291 = vpack.c.bf16 %v738, %v734
        %v1292 = vpack.c.bf16 %v746, %v742
        %v1293 = vpack.c.bf16 %v748, %v744
        %v1294 = vpack.c.bf16 %v1248, %v1246
        %v1295 = vpack.c.bf16 %v1249, %v1247
        %v1296 = vpack.c.bf16 %v1252, %v1250
        %v1297 = vpack.c.bf16 %v1253, %v1251
        %v1298 = vpack.c.bf16 %v1256, %v1254
        %v1299 = vpack.c.bf16 %v1257, %v1255
        %v1300 = vpack.c.bf16 %v1260, %v1258
        %v1301 = vpack.c.bf16 %v1261, %v1259
        %v1302 = vpack.c.bf16 %v1264, %v1262
        %v1303 = vpack.c.bf16 %v1265, %v1263
        %v1304 = vpack.c.bf16 %v1268, %v1266
        %v1305 = vpack.c.bf16 %v1269, %v1267
        %v1306 = vpack.c.bf16 %v1272, %v1270
        %v1307 = vpack.c.bf16 %v1273, %v1271
        %v1308 = vpack.c.bf16 %v1276, %v1274
        %v1309 = vpack.c.bf16 %v1277, %v1275
        %1310 = vmatprep.subr.bf16.mxu0 %v1295
        %1311 = vmatpush1.bf16.xpose.msra.mxu0 %v1294
        %1312 = vmatprep.subr.bf16.mxu0 %v1297
        %1313 = vmatpush1.bf16.xpose.msra.mxu0 %v1296
        %1314 = vmatprep.subr.bf16.mxu0 0
        %1315 = vmatpush1.bf16.xpose.msra.mxu0 0
        %1316 = vmatprep.subr.bf16.mxu0 0
        %1317 = vmatpush1.bf16.xpose.msra.mxu0 0
        %1318 = vmatprep.subr.bf16.mxu0 0
        %1319 = vmatpush1.bf16.xpose.msra.mxu0 0
        %1320 = vmatprep.subr.bf16.mxu0 0
        %1321 = vmatpush1.bf16.xpose.msra.mxu0 0
        %1322 = vmatprep.subr.bf16.mxu0 0
        %1323 = vmatpush1.bf16.xpose.msra.mxu0 0
        %1324 = vmatprep.subr.bf16.mxu0 0
        %1325 = vmatpush1.bf16.xpose.msra.mxu0 0
        %1326 = vmatprep.subr.bf16.mxu0 0
        %1327 = vmatpush1.bf16.xpose.msra.mxu0 0
        %1328 = vmatprep.subr.bf16.mxu0 0
        %1329 = vmatpush1.bf16.xpose.msra.mxu0 0
        %1330 = vmatprep.subr.bf16.mxu0 0
        %1331 = vmatpush1.bf16.xpose.msra.mxu0 0
        %1332 = vmatprep.subr.bf16.mxu0 0
        %1333 = vmatpush1.bf16.xpose.msra.mxu0 0
        %1334 = vmatprep.subr.bf16.mxu0 0
        %1335 = vmatpush1.bf16.xpose.msra.mxu0 0
        %1336 = vmatprep.subr.bf16.mxu0 0
        %1337 = vmatpush1.bf16.xpose.msra.mxu0 0
        %1338 = vmatprep.subr.bf16.mxu0 0
        %1339 = vmatpush1.bf16.xpose.msra.mxu0 0
        %1340 = vmatprep.subr.bf16.mxu0 0
        %1341 = vmatpush1.bf16.xpose.msra.mxu0 0
        %1342 = vmatprep.mubr.bf16.mxu0 %v1279
        %1343 = vmatmul.mubr.bf16.gmra.mrb[0].mxu0 %v1278
        %v1344 = vpop.f32.mrb[0].mxu0
        %v1345 = vadd.f32 0.0, %v1344
        %v1346 = vpop.f32.mrb[0].mxu0
        %v1347 = vpop.f32.mrb[0].mxu0
        %v1348 = vadd.f32 0.0, %v1347
        %v1349 = vpop.f32.mrb[0].mxu0
        %1350 = vmatprep.mubr.bf16.mxu0 %v1281
        %1351 = vmatmul.mubr.bf16.gmra.mrb[0].mxu0 %v1280
        %v1352 = vpop.f32.mrb[0].mxu0
        %v1353 = vadd.f32 0.0, %v1352
        %v1354 = vpop.f32.mrb[0].mxu0
        %v1355 = vpop.f32.mrb[0].mxu0
        %v1356 = vadd.f32 0.0, %v1355
        %v1357 = vpop.f32.mrb[0].mxu0
        %1358 = vdwg.mxu0
        %1359 = vmatprep.subr.bf16.mxu0 %v1299
        %1360 = vmatpush1.bf16.xpose.msra.mxu0 %v1298
        %1361 = vmatprep.subr.bf16.mxu0 %v1301
        %1362 = vmatpush1.bf16.xpose.msra.mxu0 %v1300
        %1363 = vmatprep.subr.bf16.mxu0 0
        %1364 = vmatpush1.bf16.xpose.msra.mxu0 0
        %1365 = vmatprep.subr.bf16.mxu0 0
        %1366 = vmatpush1.bf16.xpose.msra.mxu0 0
        %1367 = vmatprep.subr.bf16.mxu0 0
        %1368 = vmatpush1.bf16.xpose.msra.mxu0 0
        %1369 = vmatprep.subr.bf16.mxu0 0
        %1370 = vmatpush1.bf16.xpose.msra.mxu0 0
        %1371 = vmatprep.subr.bf16.mxu0 0
        %1372 = vmatpush1.bf16.xpose.msra.mxu0 0
        %1373 = vmatprep.subr.bf16.mxu0 0
        %1374 = vmatpush1.bf16.xpose.msra.mxu0 0
        %1375 = vmatprep.subr.bf16.mxu0 0
        %1376 = vmatpush1.bf16.xpose.msra.mxu0 0
        %1377 = vmatprep.subr.bf16.mxu0 0
        %1378 = vmatpush1.bf16.xpose.msra.mxu0 0
        %1379 = vmatprep.subr.bf16.mxu0 0
        %1380 = vmatpush1.bf16.xpose.msra.mxu0 0
        %1381 = vmatprep.subr.bf16.mxu0 0
        %1382 = vmatpush1.bf16.xpose.msra.mxu0 0
        %1383 = vmatprep.subr.bf16.mxu0 0
        %1384 = vmatpush1.bf16.xpose.msra.mxu0 0
        %1385 = vmatprep.subr.bf16.mxu0 0
        %1386 = vmatpush1.bf16.xpose.msra.mxu0 0
        %1387 = vmatprep.subr.bf16.mxu0 0
        %1388 = vmatpush1.bf16.xpose.msra.mxu0 0
        %1389 = vmatprep.subr.bf16.mxu0 0
        %1390 = vmatpush1.bf16.xpose.msra.mxu0 0
        %1391 = vmatprep.mubr.bf16.mxu0 %v1283
        %1392 = vmatmul.mubr.bf16.gmra.mrb[0].mxu0 %v1282
        %v1393 = vpop.f32.mrb[0].mxu0
        %v1394 = vadd.f32 0.0, %v1393
        %v1395 = vpop.f32.mrb[0].mxu0
        %v1396 = vpop.f32.mrb[0].mxu0
        %v1397 = vadd.f32 0.0, %v1396
        %v1398 = vpop.f32.mrb[0].mxu0
        %1399 = vmatprep.mubr.bf16.mxu0 %v1285
        %1400 = vmatmul.mubr.bf16.gmra.mrb[0].mxu0 %v1284
        %v1401 = vpop.f32.mrb[0].mxu0
        %v1402 = vadd.f32 0.0, %v1401
        %v1403 = vpop.f32.mrb[0].mxu0
        %v1404 = vpop.f32.mrb[0].mxu0
        %v1405 = vadd.f32 0.0, %v1404
        %v1406 = vpop.f32.mrb[0].mxu0
        %1407 = vdwg.mxu0
        %1408 = vmatprep.subr.bf16.mxu0 %v1303
        %1409 = vmatpush1.bf16.xpose.msra.mxu0 %v1302
        %1410 = vmatprep.subr.bf16.mxu0 %v1305
        %1411 = vmatpush1.bf16.xpose.msra.mxu0 %v1304
        %1412 = vmatprep.subr.bf16.mxu0 0
        %1413 = vmatpush1.bf16.xpose.msra.mxu0 0
        %1414 = vmatprep.subr.bf16.mxu0 0
        %1415 = vmatpush1.bf16.xpose.msra.mxu0 0
        %1416 = vmatprep.subr.bf16.mxu0 0
        %1417 = vmatpush1.bf16.xpose.msra.mxu0 0
        %1418 = vmatprep.subr.bf16.mxu0 0
        %1419 = vmatpush1.bf16.xpose.msra.mxu0 0
        %1420 = vmatprep.subr.bf16.mxu0 0
        %1421 = vmatpush1.bf16.xpose.msra.mxu0 0
        %1422 = vmatprep.subr.bf16.mxu0 0
        %1423 = vmatpush1.bf16.xpose.msra.mxu0 0
        %1424 = vmatprep.subr.bf16.mxu0 0
        %1425 = vmatpush1.bf16.xpose.msra.mxu0 0
        %1426 = vmatprep.subr.bf16.mxu0 0
        %1427 = vmatpush1.bf16.xpose.msra.mxu0 0
        %1428 = vmatprep.subr.bf16.mxu0 0
        %1429 = vmatpush1.bf16.xpose.msra.mxu0 0
        %1430 = vmatprep.subr.bf16.mxu0 0
        %1431 = vmatpush1.bf16.xpose.msra.mxu0 0
        %1432 = vmatprep.subr.bf16.mxu0 0
        %1433 = vmatpush1.bf16.xpose.msra.mxu0 0
        %1434 = vmatprep.subr.bf16.mxu0 0
        %1435 = vmatpush1.bf16.xpose.msra.mxu0 0
        %1436 = vmatprep.subr.bf16.mxu0 0
        %1437 = vmatpush1.bf16.xpose.msra.mxu0 0
        %1438 = vmatprep.subr.bf16.mxu0 0
        %1439 = vmatpush1.bf16.xpose.msra.mxu0 0
        %1440 = vmatprep.mubr.bf16.mxu0 %v1287
        %1441 = vmatmul.mubr.bf16.gmra.mrb[0].mxu0 %v1286
        %v1442 = vpop.f32.mrb[0].mxu0
        %v1443 = vadd.f32 0.0, %v1442
        %v1444 = vpop.f32.mrb[0].mxu0
        %v1445 = vpop.f32.mrb[0].mxu0
        %v1446 = vadd.f32 0.0, %v1445
        %v1447 = vpop.f32.mrb[0].mxu0
        %1448 = vmatprep.mubr.bf16.mxu0 %v1289
        %1449 = vmatmul.mubr.bf16.gmra.mrb[0].mxu0 %v1288
        %v1450 = vpop.f32.mrb[0].mxu0
        %v1451 = vadd.f32 0.0, %v1450
        %v1452 = vpop.f32.mrb[0].mxu0
        %v1453 = vpop.f32.mrb[0].mxu0
        %v1454 = vadd.f32 0.0, %v1453
        %v1455 = vpop.f32.mrb[0].mxu0
        %1456 = vdwg.mxu0
        %1457 = vmatprep.subr.bf16.mxu0 %v1307
        %1458 = vmatpush1.bf16.xpose.msra.mxu0 %v1306
        %1459 = vmatprep.subr.bf16.mxu0 %v1309
        %1460 = vmatpush1.bf16.xpose.msra.mxu0 %v1308
        %1461 = vmatprep.subr.bf16.mxu0 0
        %1462 = vmatpush1.bf16.xpose.msra.mxu0 0
        %1463 = vmatprep.subr.bf16.mxu0 0
        %1464 = vmatpush1.bf16.xpose.msra.mxu0 0
        %1465 = vmatprep.subr.bf16.mxu0 0
        %1466 = vmatpush1.bf16.xpose.msra.mxu0 0
        %1467 = vmatprep.subr.bf16.mxu0 0
        %1468 = vmatpush1.bf16.xpose.msra.mxu0 0
        %1469 = vmatprep.subr.bf16.mxu0 0
        %1470 = vmatpush1.bf16.xpose.msra.mxu0 0
        %1471 = vmatprep.subr.bf16.mxu0 0
        %1472 = vmatpush1.bf16.xpose.msra.mxu0 0
        %1473 = vmatprep.subr.bf16.mxu0 0
        %1474 = vmatpush1.bf16.xpose.msra.mxu0 0
        %1475 = vmatprep.subr.bf16.mxu0 0
        %1476 = vmatpush1.bf16.xpose.msra.mxu0 0
        %1477 = vmatprep.subr.bf16.mxu0 0
        %1478 = vmatpush1.bf16.xpose.msra.mxu0 0
        %1479 = vmatprep.subr.bf16.mxu0 0
        %1480 = vmatpush1.bf16.xpose.msra.mxu0 0
        %1481 = vmatprep.subr.bf16.mxu0 0
        %1482 = vmatpush1.bf16.xpose.msra.mxu0 0
        %1483 = vmatprep.subr.bf16.mxu0 0
        %1484 = vmatpush1.bf16.xpose.msra.mxu0 0
        %1485 = vmatprep.subr.bf16.mxu0 0
        %1486 = vmatpush1.bf16.xpose.msra.mxu0 0
        %1487 = vmatprep.subr.bf16.mxu0 0
        %1488 = vmatpush1.bf16.xpose.msra.mxu0 0
        %1489 = vmatprep.mubr.bf16.mxu0 %v1291
        %1490 = vmatmul.mubr.bf16.gmra.mrb[0].mxu0 %v1290
        %v1491 = vpop.f32.mrb[0].mxu0
        %v1492 = vadd.f32 0.0, %v1491
        %v1493 = vpop.f32.mrb[0].mxu0
        %v1494 = vpop.f32.mrb[0].mxu0
        %v1495 = vadd.f32 0.0, %v1494
        %v1496 = vpop.f32.mrb[0].mxu0
        %1497 = vmatprep.mubr.bf16.mxu0 %v1293
        %1498 = vmatmul.mubr.bf16.gmra.mrb[0].mxu0 %v1292
        %v1499 = vpop.f32.mrb[0].mxu0
        %v1500 = vadd.f32 0.0, %v1499
        %v1501 = vpop.f32.mrb[0].mxu0
        %v1502 = vpop.f32.mrb[0].mxu0
        %v1503 = vadd.f32 0.0, %v1502
        %v1504 = vpop.f32.mrb[0].mxu0
        %1505 = vdwg.mxu0
        %v1506 = vmul.f32 %v1345, 0.00390625
        %v1507 = vmul.f32 %v1348, 0.00390625
        %v1508 = vmul.f32 %v1353, 0.00390625
        %v1509 = vmul.f32 %v1356, 0.00390625
        %v1510 = vmul.f32 %v1394, 0.00390625
        %v1511 = vmul.f32 %v1397, 0.00390625
        %v1512 = vmul.f32 %v1402, 0.00390625
        %v1513 = vmul.f32 %v1405, 0.00390625
        %v1514 = vmul.f32 %v1443, 0.00390625
        %v1515 = vmul.f32 %v1446, 0.00390625
        %v1516 = vmul.f32 %v1451, 0.00390625
        %v1517 = vmul.f32 %v1454, 0.00390625
        %v1518 = vmul.f32 %v1492, 0.00390625
        %v1519 = vmul.f32 %v1495, 0.00390625
        %v1520 = vmul.f32 %v1500, 0.00390625
        %v1521 = vmul.f32 %v1503, 0.00390625
        %v1522 = vpack.c.bf16 %v1507, %v1506
        %v1523 = vpack.c.bf16 %v1509, %v1508
        %v1524 = vpack.c.bf16 %v1511, %v1510
        %v1525 = vpack.c.bf16 %v1513, %v1512
        %v1526 = vpack.c.bf16 %v1515, %v1514
        %v1527 = vpack.c.bf16 %v1517, %v1516
        %v1528 = vpack.c.bf16 %v1519, %v1518
        %v1529 = vpack.c.bf16 %v1521, %v1520
        %v1530 = vpack.c.bf16 %v1008, %v1006
        %v1531 = vpack.c.bf16 %v1009, %v1007
        %v1532 = vpack.c.bf16 %v1012, %v1010
        %v1533 = vpack.c.bf16 %v1013, %v1011
        %v1534 = vpack.c.bf16 %v1016, %v1014
        %v1535 = vpack.c.bf16 %v1017, %v1015
        %v1536 = vpack.c.bf16 %v1020, %v1018
        %v1537 = vpack.c.bf16 %v1021, %v1019
        %v1538 = vpack.c.bf16 %v1024, %v1022
        %v1539 = vpack.c.bf16 %v1025, %v1023
        %v1540 = vpack.c.bf16 %v1028, %v1026
        %v1541 = vpack.c.bf16 %v1029, %v1027
        %v1542 = vpack.c.bf16 %v1032, %v1030
        %v1543 = vpack.c.bf16 %v1033, %v1031
        %v1544 = vpack.c.bf16 %v1036, %v1034
        %v1545 = vpack.c.bf16 %v1037, %v1035
        %v1547 = vsel %vm404, %v1522, 0
        %v1550 = vsel %vm404, %v1523, 0
        %1552 = vmatprep.subr.bf16.mxu0 %v1531
        %1553 = vmatpush1.bf16.msra.mxu0 %v1530
        %1554 = vmatprep.subr.bf16.mxu0 %v1533
        %1555 = vmatpush1.bf16.msra.mxu0 %v1532
        %1556 = vmatprep.subr.bf16.mxu0 0
        %1557 = vmatpush1.bf16.msra.mxu0 0
        %1558 = vmatprep.subr.bf16.mxu0 0
        %1559 = vmatpush1.bf16.msra.mxu0 0
        %1560 = vmatprep.subr.bf16.mxu0 0
        %1561 = vmatpush1.bf16.msra.mxu0 0
        %1562 = vmatprep.subr.bf16.mxu0 0
        %1563 = vmatpush1.bf16.msra.mxu0 0
        %1564 = vmatprep.subr.bf16.mxu0 0
        %1565 = vmatpush1.bf16.msra.mxu0 0
        %1566 = vmatprep.subr.bf16.mxu0 0
        %1567 = vmatpush1.bf16.msra.mxu0 0
        %1568 = vmatprep.subr.bf16.mxu0 0
        %1569 = vmatpush1.bf16.msra.mxu0 0
        %1570 = vmatprep.subr.bf16.mxu0 0
        %1571 = vmatpush1.bf16.msra.mxu0 0
        %1572 = vmatprep.subr.bf16.mxu0 0
        %1573 = vmatpush1.bf16.msra.mxu0 0
        %1574 = vmatprep.subr.bf16.mxu0 0
        %1575 = vmatpush1.bf16.msra.mxu0 0
        %1576 = vmatprep.subr.bf16.mxu0 0
        %1577 = vmatpush1.bf16.msra.mxu0 0
        %1578 = vmatprep.subr.bf16.mxu0 0
        %1579 = vmatpush1.bf16.msra.mxu0 0
        %1580 = vmatprep.subr.bf16.mxu0 0
        %1581 = vmatpush1.bf16.msra.mxu0 0
        %1582 = vmatprep.subr.bf16.mxu0 0
        %1583 = vmatpush1.bf16.msra.mxu0 0
        %1584 = vmatprep.mubr.bf16.mxu0 0
        %1585 = vmatmul.mubr.bf16.gmra.mrb[0].mxu0 %v1547
        %v1586 = vpop.f32.mrb[0].mxu0
        %v1587 = vadd.f32 0.0, %v1586
        %v1588 = vpop.f32.mrb[0].mxu0
        %v1589 = vadd.f32 0.0, %v1588
        %v1590 = vpop.f32.mrb[0].mxu0
        %v1591 = vadd.f32 0.0, %v1590
        %v1592 = vpop.f32.mrb[0].mxu0
        %v1593 = vadd.f32 0.0, %v1592
        %1594 = vmatprep.mubr.bf16.mxu0 0
        %1595 = vmatmul.mubr.bf16.gmra.mrb[0].mxu0 %v1550
        %v1596 = vpop.f32.mrb[0].mxu0
        %v1597 = vadd.f32 0.0, %v1596
        %v1598 = vpop.f32.mrb[0].mxu0
        %v1599 = vadd.f32 0.0, %v1598
        %v1600 = vpop.f32.mrb[0].mxu0
        %v1601 = vadd.f32 0.0, %v1600
        %v1602 = vpop.f32.mrb[0].mxu0
        %v1603 = vadd.f32 0.0, %v1602
        %1604 = vdwg.mxu0
        %v1606 = vsel %vm404, %v1524, 0
        %v1609 = vsel %vm404, %v1525, 0
        %1611 = vmatprep.subr.bf16.mxu0 %v1535
        %1612 = vmatpush1.bf16.msra.mxu0 %v1534
        %1613 = vmatprep.subr.bf16.mxu0 %v1537
        %1614 = vmatpush1.bf16.msra.mxu0 %v1536
        %1615 = vmatprep.subr.bf16.mxu0 0
        %1616 = vmatpush1.bf16.msra.mxu0 0
        %1617 = vmatprep.subr.bf16.mxu0 0
        %1618 = vmatpush1.bf16.msra.mxu0 0
        %1619 = vmatprep.subr.bf16.mxu0 0
        %1620 = vmatpush1.bf16.msra.mxu0 0
        %1621 = vmatprep.subr.bf16.mxu0 0
        %1622 = vmatpush1.bf16.msra.mxu0 0
        %1623 = vmatprep.subr.bf16.mxu0 0
        %1624 = vmatpush1.bf16.msra.mxu0 0
        %1625 = vmatprep.subr.bf16.mxu0 0
        %1626 = vmatpush1.bf16.msra.mxu0 0
        %1627 = vmatprep.subr.bf16.mxu0 0
        %1628 = vmatpush1.bf16.msra.mxu0 0
        %1629 = vmatprep.subr.bf16.mxu0 0
        %1630 = vmatpush1.bf16.msra.mxu0 0
        %1631 = vmatprep.subr.bf16.mxu0 0
        %1632 = vmatpush1.bf16.msra.mxu0 0
        %1633 = vmatprep.subr.bf16.mxu0 0
        %1634 = vmatpush1.bf16.msra.mxu0 0
        %1635 = vmatprep.subr.bf16.mxu0 0
        %1636 = vmatpush1.bf16.msra.mxu0 0
        %1637 = vmatprep.subr.bf16.mxu0 0
        %1638 = vmatpush1.bf16.msra.mxu0 0
        %1639 = vmatprep.subr.bf16.mxu0 0
        %1640 = vmatpush1.bf16.msra.mxu0 0
        %1641 = vmatprep.subr.bf16.mxu0 0
        %1642 = vmatpush1.bf16.msra.mxu0 0
        %1643 = vmatprep.mubr.bf16.mxu0 0
        %1644 = vmatmul.mubr.bf16.gmra.mrb[0].mxu0 %v1606
        %v1645 = vpop.f32.mrb[0].mxu0
        %v1646 = vadd.f32 0.0, %v1645
        %v1647 = vpop.f32.mrb[0].mxu0
        %v1648 = vadd.f32 0.0, %v1647
        %v1649 = vpop.f32.mrb[0].mxu0
        %v1650 = vadd.f32 0.0, %v1649
        %v1651 = vpop.f32.mrb[0].mxu0
        %v1652 = vadd.f32 0.0, %v1651
        %1653 = vmatprep.mubr.bf16.mxu0 0
        %1654 = vmatmul.mubr.bf16.gmra.mrb[0].mxu0 %v1609
        %v1655 = vpop.f32.mrb[0].mxu0
        %v1656 = vadd.f32 0.0, %v1655
        %v1657 = vpop.f32.mrb[0].mxu0
        %v1658 = vadd.f32 0.0, %v1657
        %v1659 = vpop.f32.mrb[0].mxu0
        %v1660 = vadd.f32 0.0, %v1659
        %v1661 = vpop.f32.mrb[0].mxu0
        %v1662 = vadd.f32 0.0, %v1661
        %1663 = vdwg.mxu0
        %v1665 = vsel %vm404, %v1526, 0
        %v1668 = vsel %vm404, %v1527, 0
        %1670 = vmatprep.subr.bf16.mxu0 %v1539
        %1671 = vmatpush1.bf16.msra.mxu0 %v1538
        %1672 = vmatprep.subr.bf16.mxu0 %v1541
        %1673 = vmatpush1.bf16.msra.mxu0 %v1540
        %1674 = vmatprep.subr.bf16.mxu0 0
        %1675 = vmatpush1.bf16.msra.mxu0 0
        %1676 = vmatprep.subr.bf16.mxu0 0
        %1677 = vmatpush1.bf16.msra.mxu0 0
        %1678 = vmatprep.subr.bf16.mxu0 0
        %1679 = vmatpush1.bf16.msra.mxu0 0
        %1680 = vmatprep.subr.bf16.mxu0 0
        %1681 = vmatpush1.bf16.msra.mxu0 0
        %1682 = vmatprep.subr.bf16.mxu0 0
        %1683 = vmatpush1.bf16.msra.mxu0 0
        %1684 = vmatprep.subr.bf16.mxu0 0
        %1685 = vmatpush1.bf16.msra.mxu0 0
        %1686 = vmatprep.subr.bf16.mxu0 0
        %1687 = vmatpush1.bf16.msra.mxu0 0
        %1688 = vmatprep.subr.bf16.mxu0 0
        %1689 = vmatpush1.bf16.msra.mxu0 0
        %1690 = vmatprep.subr.bf16.mxu0 0
        %1691 = vmatpush1.bf16.msra.mxu0 0
        %1692 = vmatprep.subr.bf16.mxu0 0
        %1693 = vmatpush1.bf16.msra.mxu0 0
        %1694 = vmatprep.subr.bf16.mxu0 0
        %1695 = vmatpush1.bf16.msra.mxu0 0
        %1696 = vmatprep.subr.bf16.mxu0 0
        %1697 = vmatpush1.bf16.msra.mxu0 0
        %1698 = vmatprep.subr.bf16.mxu0 0
        %1699 = vmatpush1.bf16.msra.mxu0 0
        %1700 = vmatprep.subr.bf16.mxu0 0
        %1701 = vmatpush1.bf16.msra.mxu0 0
        %1702 = vmatprep.mubr.bf16.mxu0 0
        %1703 = vmatmul.mubr.bf16.gmra.mrb[0].mxu0 %v1665
        %v1704 = vpop.f32.mrb[0].mxu0
        %v1705 = vadd.f32 0.0, %v1704
        %v1706 = vpop.f32.mrb[0].mxu0
        %v1707 = vadd.f32 0.0, %v1706
        %v1708 = vpop.f32.mrb[0].mxu0
        %v1709 = vadd.f32 0.0, %v1708
        %v1710 = vpop.f32.mrb[0].mxu0
        %v1711 = vadd.f32 0.0, %v1710
        %1712 = vmatprep.mubr.bf16.mxu0 0
        %1713 = vmatmul.mubr.bf16.gmra.mrb[0].mxu0 %v1668
        %v1714 = vpop.f32.mrb[0].mxu0
        %v1715 = vadd.f32 0.0, %v1714
        %v1716 = vpop.f32.mrb[0].mxu0
        %v1717 = vadd.f32 0.0, %v1716
        %v1718 = vpop.f32.mrb[0].mxu0
        %v1719 = vadd.f32 0.0, %v1718
        %v1720 = vpop.f32.mrb[0].mxu0
        %v1721 = vadd.f32 0.0, %v1720
        %1722 = vdwg.mxu0
        %v1724 = vsel %vm404, %v1528, 0
        %v1727 = vsel %vm404, %v1529, 0
        %1729 = vmatprep.subr.bf16.mxu0 %v1543
        %1730 = vmatpush1.bf16.msra.mxu0 %v1542
        %1731 = vmatprep.subr.bf16.mxu0 %v1545
        %1732 = vmatpush1.bf16.msra.mxu0 %v1544
        %1733 = vmatprep.subr.bf16.mxu0 0
        %1734 = vmatpush1.bf16.msra.mxu0 0
        %1735 = vmatprep.subr.bf16.mxu0 0
        %1736 = vmatpush1.bf16.msra.mxu0 0
        %1737 = vmatprep.subr.bf16.mxu0 0
        %1738 = vmatpush1.bf16.msra.mxu0 0
        %1739 = vmatprep.subr.bf16.mxu0 0
        %1740 = vmatpush1.bf16.msra.mxu0 0
        %1741 = vmatprep.subr.bf16.mxu0 0
        %1742 = vmatpush1.bf16.msra.mxu0 0
        %1743 = vmatprep.subr.bf16.mxu0 0
        %1744 = vmatpush1.bf16.msra.mxu0 0
        %1745 = vmatprep.subr.bf16.mxu0 0
        %1746 = vmatpush1.bf16.msra.mxu0 0
        %1747 = vmatprep.subr.bf16.mxu0 0
        %1748 = vmatpush1.bf16.msra.mxu0 0
        %1749 = vmatprep.subr.bf16.mxu0 0
        %1750 = vmatpush1.bf16.msra.mxu0 0
        %1751 = vmatprep.subr.bf16.mxu0 0
        %1752 = vmatpush1.bf16.msra.mxu0 0
        %1753 = vmatprep.subr.bf16.mxu0 0
        %1754 = vmatpush1.bf16.msra.mxu0 0
        %1755 = vmatprep.subr.bf16.mxu0 0
        %1756 = vmatpush1.bf16.msra.mxu0 0
        %1757 = vmatprep.subr.bf16.mxu0 0
        %1758 = vmatpush1.bf16.msra.mxu0 0
        %1759 = vmatprep.subr.bf16.mxu0 0
        %1760 = vmatpush1.bf16.msra.mxu0 0
        %1761 = vmatprep.mubr.bf16.mxu0 0
        %1762 = vmatmul.mubr.bf16.gmra.mrb[0].mxu0 %v1724
        %v1763 = vpop.f32.mrb[0].mxu0
        %v1764 = vadd.f32 0.0, %v1763
        %v1765 = vpop.f32.mrb[0].mxu0
        %v1766 = vadd.f32 0.0, %v1765
        %v1767 = vpop.f32.mrb[0].mxu0
        %v1768 = vadd.f32 0.0, %v1767
        %v1769 = vpop.f32.mrb[0].mxu0
        %v1770 = vadd.f32 0.0, %v1769
        %1771 = vmatprep.mubr.bf16.mxu0 0
        %1772 = vmatmul.mubr.bf16.gmra.mrb[0].mxu0 %v1727
        %v1773 = vpop.f32.mrb[0].mxu0
        %v1774 = vadd.f32 0.0, %v1773
        %v1775 = vpop.f32.mrb[0].mxu0
        %v1776 = vadd.f32 0.0, %v1775
        %v1777 = vpop.f32.mrb[0].mxu0
        %v1778 = vadd.f32 0.0, %v1777
        %v1779 = vpop.f32.mrb[0].mxu0
        %v1780 = vadd.f32 0.0, %v1779
        %1781 = vdwg.mxu0
        %v1782 = vld [vmem:[%s2] sm:$0xf]
        %v1783 = vld [vmem:[%s2 + $0x4] sm:$0xf]
        %v1784 = vld [vmem:[%s2 + $0x8] sm:$0xf]
        %v1785 = vld [vmem:[%s2 + $0xc] sm:$0xf]
        %v1786 = vpack.c.bf16 %v1591, %v1587
        %v1787 = vpack.c.bf16 %v1593, %v1589
        %v1788 = vpack.c.bf16 %v1601, %v1597
        %v1789 = vpack.c.bf16 %v1603, %v1599
        %v1790 = vpack.c.bf16 %v1650, %v1646
        %v1791 = vpack.c.bf16 %v1652, %v1648
        %v1792 = vpack.c.bf16 %v1660, %v1656
        %v1793 = vpack.c.bf16 %v1662, %v1658
        %v1794 = vpack.c.bf16 %v1709, %v1705
        %v1795 = vpack.c.bf16 %v1711, %v1707
        %v1796 = vpack.c.bf16 %v1719, %v1715
        %v1797 = vpack.c.bf16 %v1721, %v1717
        %v1798 = vpack.c.bf16 %v1768, %v1764
        %v1799 = vpack.c.bf16 %v1770, %v1766
        %v1800 = vpack.c.bf16 %v1778, %v1774
        %v1801 = vpack.c.bf16 %v1780, %v1776
        %v1802 = vld [vmem:[%s3] sm:$0xff]
        %v1803 = vld [vmem:[%s3 + $0x8] sm:$0xff]
        %v1804 = vld [vmem:[%s3 + $0x10] sm:$0xff]
        %v1805 = vld [vmem:[%s3 + $0x18] sm:$0xff]
        %1807 = vset.pattern.permute.xlu0 0
        %1808 = vperm.xlu0 %1807, %v1802
        %v1809 = vpop.permute.xlu0 %1808
        %1812 = vset.pattern.permute.xlu0 0
        %1813 = vperm.xlu0 %1812, %v1803
        %v1814 = vpop.permute.xlu0 %1813
        %1817 = vset.pattern.permute.xlu0 0
        %1818 = vperm.xlu0 %1817, %v1804
        %v1819 = vpop.permute.xlu0 %1818
        %1822 = vset.pattern.permute.xlu0 0
        %1823 = vperm.xlu0 %1822, %v1805
        %v1824 = vpop.permute.xlu0 %1823
        %v1830 = vunpack.c.l.b16 %v1782
        %v1831 = vunpack.c.l.b16 %v1783
        %v1832 = vunpack.c.l.b16 %v1784
        %v1833 = vunpack.c.l.b16 %v1785
        %v1834 = vpack.c.b16 %v1831, %v1830
        %v1835 = vpack.c.b16 %v1833, %v1832
        %1838 = vmatprep.subr.bf16.mxu0 %v1787
        %1839 = vmatpush1.bf16.msra.mxu0 %v1786
        %1840 = vmatprep.subr.bf16.mxu0 %v1789
        %1841 = vmatpush1.bf16.msra.mxu0 %v1788
        %1842 = vmatprep.subr.bf16.mxu0 %v1791
        %1843 = vmatpush1.bf16.msra.mxu0 %v1790
        %1844 = vmatprep.subr.bf16.mxu0 %v1793
        %1845 = vmatpush1.bf16.msra.mxu0 %v1792
        %1846 = vmatprep.subr.bf16.mxu0 %v1795
        %1847 = vmatpush1.bf16.msra.mxu0 %v1794
        %1848 = vmatprep.subr.bf16.mxu0 %v1797
        %1849 = vmatpush1.bf16.msra.mxu0 %v1796
        %1850 = vmatprep.subr.bf16.mxu0 %v1799
        %1851 = vmatpush1.bf16.msra.mxu0 %v1798
        %1852 = vmatprep.subr.bf16.mxu0 %v1801
        %1853 = vmatpush1.bf16.msra.mxu0 %v1800
        %1854 = vmatprep.subr.bf16.mxu0 0
        %1855 = vmatpush1.bf16.msra.mxu0 0
        %1856 = vmatprep.subr.bf16.mxu0 0
        %1857 = vmatpush1.bf16.msra.mxu0 0
        %1858 = vmatprep.subr.bf16.mxu0 0
        %1859 = vmatpush1.bf16.msra.mxu0 0
        %1860 = vmatprep.subr.bf16.mxu0 0
        %1861 = vmatpush1.bf16.msra.mxu0 0
        %1862 = vmatprep.subr.bf16.mxu0 0
        %1863 = vmatpush1.bf16.msra.mxu0 0
        %1864 = vmatprep.subr.bf16.mxu0 0
        %1865 = vmatpush1.bf16.msra.mxu0 0
        %1866 = vmatprep.subr.bf16.mxu0 0
        %1867 = vmatpush1.bf16.msra.mxu0 0
        %1868 = vmatprep.subr.bf16.mxu0 0
        %1869 = vmatpush1.bf16.msra.mxu0 0
        %1870 = vmatprep.mubr.bf16.mxu0 0
        %1871 = vmatmul.mubr.bf16.gmra.mrb[0].mxu0 %v1834
        %v1872 = vpop.f32.mrb[0].mxu0
        %v1873 = vadd.f32 %v1809, %v1872
        %v1874 = vpop.f32.mrb[0].mxu0
        %v1875 = vadd.f32 %v1809, %v1874
        %v1876 = vpop.f32.mrb[0].mxu0
        %v1877 = vadd.f32 %v1814, %v1876
        %v1878 = vpop.f32.mrb[0].mxu0
        %v1879 = vadd.f32 %v1814, %v1878
        %1880 = vmatprep.mubr.bf16.mxu0 0
        %1881 = vmatmul.mubr.bf16.gmra.mrb[0].mxu0 %v1835
        %v1882 = vpop.f32.mrb[0].mxu0
        %v1883 = vadd.f32 %v1819, %v1882
        %v1884 = vpop.f32.mrb[0].mxu0
        %v1885 = vadd.f32 %v1819, %v1884
        %v1886 = vpop.f32.mrb[0].mxu0
        %v1887 = vadd.f32 %v1824, %v1886
        %v1888 = vpop.f32.mrb[0].mxu0
        %v1889 = vadd.f32 %v1824, %v1888
        %1890 = vdwg.mxu0
        %v1891 = vadd.f32 %v1873, %v1877
        %v1892 = vadd.f32 %v1891, %v1883
        %v1893 = vadd.f32 %v1892, %v1887
        %v1894 = vrot.slane %v1893, 4
        %v1895 = vadd.f32 %v1893, %v1894
        %v1896 = vrot.slane %v1895, 2
        %v1897 = vadd.f32 %v1895, %v1896
        %v1898 = vrot.slane %v1897, 1
        %v1899 = vadd.f32 %v1897, %v1898
        %v1900 = vadd.f32 %v1875, %v1879
        %v1901 = vadd.f32 %v1900, %v1885
        %v1902 = vadd.f32 %v1901, %v1889
        %v1903 = vrot.slane %v1902, 4
        %v1904 = vadd.f32 %v1902, %v1903
        %v1905 = vrot.slane %v1904, 2
        %v1906 = vadd.f32 %v1904, %v1905
        %v1907 = vrot.slane %v1906, 1
        %v1908 = vadd.f32 %v1906, %v1907
        %v1909 = vrcp.pop 32.0
        %v1910 = vmul.f32 %v1899, %v1909
        %v1911 = vmul.f32 %v1908, %v1909
        %v1912 = vsub.f32 %v1873, %v1910
        %v1913 = vsub.f32 %v1875, %v1911
        %v1914 = vsub.f32 %v1877, %v1910
        %v1915 = vsub.f32 %v1879, %v1911
        %v1916 = vsub.f32 %v1883, %v1910
        %v1917 = vsub.f32 %v1885, %v1911
        %v1918 = vsub.f32 %v1887, %v1910
        %v1919 = vsub.f32 %v1889, %v1911
        %v1920 = vmul.f32 %v1912, %v1912
        %v1921 = vmul.f32 %v1913, %v1913
        %v1922 = vmul.f32 %v1914, %v1914
        %v1923 = vmul.f32 %v1915, %v1915
        %v1924 = vmul.f32 %v1916, %v1916
        %v1925 = vmul.f32 %v1917, %v1917
        %v1926 = vmul.f32 %v1918, %v1918
        %v1927 = vmul.f32 %v1919, %v1919
        %v1928 = vadd.f32 %v1920, %v1922
        %v1929 = vadd.f32 %v1928, %v1924
        %v1930 = vadd.f32 %v1929, %v1926
        %v1931 = vrot.slane %v1930, 4
        %v1932 = vadd.f32 %v1930, %v1931
        %v1933 = vrot.slane %v1932, 2
        %v1934 = vadd.f32 %v1932, %v1933
        %v1935 = vrot.slane %v1934, 1
        %v1936 = vadd.f32 %v1934, %v1935
        %v1937 = vadd.f32 %v1921, %v1923
        %v1938 = vadd.f32 %v1937, %v1925
        %v1939 = vadd.f32 %v1938, %v1927
        %v1940 = vrot.slane %v1939, 4
        %v1941 = vadd.f32 %v1939, %v1940
        %v1942 = vrot.slane %v1941, 2
        %v1943 = vadd.f32 %v1941, %v1942
        %v1944 = vrot.slane %v1943, 1
        %v1945 = vadd.f32 %v1943, %v1944
        %v1946 = vmul.f32 %v1936, %v1909
        %v1947 = vmul.f32 %v1945, %v1909
        %v1948 = vadd.f32 %v1946, 1e-05
        %v1949 = vadd.f32 %v1947, 1e-05
        %v1950 = vrsqrt.pop %v1948
        %v1951 = vrsqrt.pop %v1949
        %v1952 = vmul.f32 %v1912, %v1950
        %v1953 = vmul.f32 %v1913, %v1951
        %v1954 = vmul.f32 %v1914, %v1950
        %v1955 = vmul.f32 %v1915, %v1951
        %v1956 = vmul.f32 %v1916, %v1950
        %v1957 = vmul.f32 %v1917, %v1951
        %v1958 = vmul.f32 %v1918, %v1950
        %v1959 = vmul.f32 %v1919, %v1951
        %v1960 = vld [vmem:[%s4] sm:$0xff]
        %v1961 = vld [vmem:[%s4 + $0x8] sm:$0xff]
        %v1962 = vld [vmem:[%s4 + $0x10] sm:$0xff]
        %v1963 = vld [vmem:[%s4 + $0x18] sm:$0xff]
        %1965 = vset.pattern.permute.xlu0 0
        %1966 = vperm.xlu0 %1965, %v1960
        %v1967 = vpop.permute.xlu0 %1966
        %1970 = vset.pattern.permute.xlu0 0
        %1971 = vperm.xlu0 %1970, %v1961
        %v1972 = vpop.permute.xlu0 %1971
        %1975 = vset.pattern.permute.xlu0 0
        %1976 = vperm.xlu0 %1975, %v1962
        %v1977 = vpop.permute.xlu0 %1976
        %1980 = vset.pattern.permute.xlu0 0
        %1981 = vperm.xlu0 %1980, %v1963
        %v1982 = vpop.permute.xlu0 %1981
        %v1984 = vmul.f32 %v1952, %v1967
        %v1985 = vmul.f32 %v1953, %v1967
        %v1986 = vmul.f32 %v1954, %v1972
        %v1987 = vmul.f32 %v1955, %v1972
        %v1988 = vmul.f32 %v1956, %v1977
        %v1989 = vmul.f32 %v1957, %v1977
        %v1990 = vmul.f32 %v1958, %v1982
        %v1991 = vmul.f32 %v1959, %v1982
        %1992 = vst [vmem:[%s217] sm:$0xff] %v1984
        %1993 = vst [vmem:[%s217 + $0x8] sm:$0xff] %v1985
        %1994 = vst [vmem:[%s217 + $0x10] sm:$0xff] %v1986
        %1995 = vst [vmem:[%s217 + $0x18] sm:$0xff] %v1987
        %1996 = vst [vmem:[%s217 + $0x20] sm:$0xff] %v1988
        %1997 = vst [vmem:[%s217 + $0x28] sm:$0xff] %v1989
        %1998 = vst [vmem:[%s217 + $0x30] sm:$0xff] %v1990
        %1999 = vst [vmem:[%s217 + $0x38] sm:$0xff] %v1991
        %s2000 = sand.u32 %s137, 1
        %s2001 = scalar_lea.sflag [#allocation3], %s2000
        %s2002 = sand.u32 %s137, 1
        %s2003 = smul.addr %s2002, 64
        %s2004 = scalar_lea.vmem [#allocation2], %s2003
        // Predicated region
        $region41: #{tpu_custom_call.1} parent=39 // pred_check
          %p2005 = pneg %p147
        $region42: #{tpu_custom_call.1} parent=39 // pred_check_branch
          %2007 = sbr.rel (%p2005) target = $region44
        $region43: #{tpu_custom_call.1} parent=39 // pred_region
          %s2009 = ssub.s32 1024, 1024
          %2010 = vsyncadd %s2001, %s2009
          %s2011 = smul.addr %s19, 8
          %s2012 = smul.addr %s2011, 128
          %s2013 = scalar_lea.hbm %s5, %s2012
          %s2014 = sshll.u32 %s2004, 4
          %s2015 = int_to_ptr.vmem [resolvable:$true] %s2014
          %2020 = dma.vmem_to_hbm [thread:$0]  %s2015, 1024, %s2013, %s2001, 256, 256, 16
        $region44: #{tpu_custom_call.1} parent=39 // pred_fallthru
          _
      $region40: #{tpu_custom_call.1} parent=5 // pred_fallthru
        _
      %p2021 = scmp.le.s32.totalorder 2, %s14
      // Predicated region
      $region45: #{tpu_custom_call.1} parent=5 // pred_check
        %p2022 = pneg %p2021
      $region46: #{tpu_custom_call.1} parent=5 // pred_check_branch
        %2024 = sbr.rel (%p2022) target = $region48
      $region47: #{tpu_custom_call.1} parent=5 // pred_region
        %s2025 = ssub.s32 %s14, 2
        // Predicated region
        $region49: #{tpu_custom_call.1} parent=47 // pred_check
          %p2026 = pneg %p153
        $region50: #{tpu_custom_call.1} parent=47 // pred_check_branch
          %2028 = sbr.rel (%p2026) target = $region52
        $region51: #{tpu_custom_call.1} parent=47 // pred_region
          %s2029 = sand.u32 %s138, 1
          %s2030 = scalar_lea.sflag [#allocation3], %s2029
          %s2031 = sand.u32 %s138, 1
          %s2032 = smul.addr %s2031, 64
          %s2033 = scalar_lea.vmem [#allocation2], %s2032
          %2034 = dma.done %s2030, 1024
        $region52: #{tpu_custom_call.1} parent=47 // pred_fallthru
          _
      $region48: #{tpu_custom_call.1} parent=5 // pred_fallthru
        _
    $region6: #{tpu_custom_call.1} parent=1 // loop_footer
      %s18 = sadd.s32 1, %s14
    $region7: #{tpu_custom_call.1} parent=1 // loop_footer_branch
      %13 = sbr.rel target = $region3
    $region8: #{tpu_custom_call.1} parent=1 // loop_exit
      _
    %2035 = vsyncpa [#allocation3], 1
    %s2036 = scalar_lea.sflag [#allocation3], 1
    %2037 = vsyncpa %s2036, 1

</llo_original>
